<compile_context>
chip_gen: v6e
topology: v6e:2x2x1
jax: 0.10.0
libtpu: 0.0.40
codegen_flags: <defaults>
</compile_context>

<pallas_src>
import functools

import jax
import jax.numpy as jnp
from jax.experimental import pallas as pl
from jax.experimental.pallas import tpu as pltpu

BLOCK_SIZE = 64                    # max sequence length in the PyTorch module
N_EMBD = 128
NUM_HEADS = 4
HEAD_SIZE = N_EMBD // NUM_HEADS    # 32; concat(heads) == n_embd as proj expects


def _mha_kernel(x_ref, wqkv_ref, wp_ref, bp_ref, o_ref):
    """Batch-blocked fused multi-head causal attention + output projection.

    x_ref    : (BB, T, C)   batch block (f32)
    wqkv_ref : (C, 3C)      fused [Wq*scale | Wk | Wv], bf16, (in, out) layout
    wp_ref   : (C, C)       output projection, bf16, (in, out) layout
    bp_ref   : (1, C)       output projection bias, f32
    o_ref    : (BB, T, C)
    """
    BB, T, C = x_ref.shape
    H, HS = NUM_HEADS, HEAD_SIZE
    M = BB * T

    # One big lane-dense QKV projection on the whole batch block:
    # (M, C) @ (C, 3C) in bf16 with f32 accumulation.
    x2d = x_ref[...].reshape(M, C).astype(jnp.bfloat16)
    qkv = jnp.dot(x2d, wqkv_ref[...], preferred_element_type=jnp.float32)  # (M, 3C)

    # Causal mask built once per grid step (hoisted out of the head loop).
    row = jax.lax.broadcasted_iota(jnp.int32, (T, T), 0)
    col = jax.lax.broadcasted_iota(jnp.int32, (T, T), 1)
    causal = (row >= col)[None, :, :]                      # (1, T, T) -> bcast over BB

    acc = jnp.zeros((M, C), jnp.float32)
    for h in range(H):                                     # 4 heads, unrolled at trace
        q_sl = slice(h * HS, (h + 1) * HS)
        k_sl = slice(C + h * HS, C + (h + 1) * HS)
        v_sl = slice(2 * C + h * HS, 2 * C + (h + 1) * HS)

        qh = qkv[:, q_sl].reshape(BB, T, HS).astype(jnp.bfloat16)  # scale already folded in
        kh = qkv[:, k_sl].reshape(BB, T, HS).astype(jnp.bfloat16)
        vh = qkv[:, v_sl].reshape(BB, T, HS).astype(jnp.bfloat16)

        # (BB, T, T) attention scores, f32.
        s = jnp.einsum("bqd,bkd->bqk", qh, kh, preferred_element_type=jnp.float32)
        s = jnp.where(causal, s, -jnp.inf)
        s = s - jnp.max(s, axis=-1, keepdims=True)
        p = jnp.exp(s)                                     # unnormalized softmax numerator
        inv_l = pl.reciprocal(jnp.sum(p, axis=-1, keepdims=True), approx=True)

        # (BB, T, HS) head output; normalize the small output, not the scores.
        oh = jnp.einsum("bqk,bkd->bqd", p.astype(jnp.bfloat16), vh,
                        preferred_element_type=jnp.float32)
        oh = (oh * inv_l).reshape(M, HS).astype(jnp.bfloat16)

        # Per-head slice of the output projection; accumulate in f32.
        # Replaces concat(heads) @ Wp -> keeps every matmul output 128 lanes wide.
        wp_h = wp_ref[pl.ds(h * HS, HS), :]                # (HS, C) bf16
        acc = acc + jnp.dot(oh, wp_h, preferred_element_type=jnp.float32)

    out = acc + bp_ref[...]                                # (1, C) broadcast over M rows
    # (dropout on attention weights / after projection: identity in eval mode)
    o_ref[...] = out.reshape(BB, T, C).astype(o_ref.dtype)


def _choose_batch_block(B, T, target_rows=512, min_rows=256):
    """Largest divisor of B with BB*T <= target_rows; prefer >=2 grid steps
    (v7x has 2 TensorCores) as long as blocks keep >= min_rows rows."""
    divisors = [d for d in range(1, B + 1) if B % d == 0]
    fitting = [d for d in divisors if d * T <= target_rows] or [1]
    bb = max(fitting)
    if B // bb < 2:
        smaller = [d for d in fitting if d < bb and d * T >= min_rows]
        if smaller:
            bb = max(smaller)
    return bb


@functools.partial(jax.jit, static_argnames=())
def multi_head_attention(x, wq_t, wk_t, wv_t, wp_t, bp):
    """x: (B, T, C) float32.  Weights already transposed to (in, out). bp: (1, C)."""
    B, T, C = x.shape
    assert C == N_EMBD and T <= BLOCK_SIZE

    # Fold the 1/sqrt(C) attention scale into the Q weights (free), fuse QKV into
    # one (C, 3C) matrix, and cast matmul weights to bf16 (halves DMA bytes,
    # native MXU rate). Bias stays f32 (added to the f32 accumulator).
    scale = jnp.float32(C) ** -0.5     # NOTE: scaled by C, not head_size (matches module)
    wqkv = jnp.concatenate([wq_t * scale, wk_t, wv_t], axis=1).astype(jnp.bfloat16)
    wp_bf = wp_t.astype(jnp.bfloat16)
    bp_f32 = bp.reshape(1, C).astype(jnp.float32)

    BB = _choose_batch_block(B, T)
    grid = (B // BB,)

    return pl.pallas_call(
        _mha_kernel,
        out_shape=jax.ShapeDtypeStruct((B, T, C), x.dtype),
        grid_spec=pltpu.PrefetchScalarGridSpec(
            num_scalar_prefetch=0,
            grid=grid,
            in_specs=[
                pl.BlockSpec((BB, T, C), lambda i: (i, 0, 0)),      # x
                pl.BlockSpec((C, 3 * C), lambda i: (0, 0)),          # fused QKV weights
                pl.BlockSpec((C, C), lambda i: (0, 0)),              # proj weights
                pl.BlockSpec((1, C), lambda i: (0, 0)),              # proj bias
            ],
            out_specs=pl.BlockSpec((BB, T, C), lambda i: (i, 0, 0)),
        ),
        compiler_params=pltpu.CompilerParams(
            dimension_semantics=("parallel",)),
    )(x, wqkv, wp_bf, bp_f32)


def _reference(x, wq_t, wk_t, wv_t, wp_t, bp):
    """Plain-JAX f32 mirror of the PyTorch forward (eval mode), for verification."""
    B, T, C = x.shape
    scale = C ** (-0.5)
    q = x @ wq_t
    k = x @ wk_t
    v = x @ wv_t
    mask = jnp.tril(jnp.ones((T, T), dtype=bool))
    outs = []
    for h in range(NUM_HEADS):
        sl = slice(h * HEAD_SIZE, (h + 1) * HEAD_SIZE)
        wei = jnp.einsum("btd,bsd->bts", q[..., sl], k[..., sl]) * scale
        wei = jnp.where(mask, wei, -jnp.inf)
        wei = jax.nn.softmax(wei, axis=-1)
        outs.append(jnp.einsum("bts,bsd->btd", wei, v[..., sl]))
    cat = jnp.concatenate(outs, axis=-1)
    return cat @ wp_t + bp[0]


if __name__ == "__main__":
    key = jax.random.PRNGKey(0)
    B, T, C = 2, 8, N_EMBD

    keys = jax.random.split(key, 7)
    x = jax.random.normal(keys[0], (B, T, C), dtype=jnp.float32)

    # Deterministic parameter init (PyTorch Linear-style uniform bound 1/sqrt(in)).
    bound = 1.0 / (C ** 0.5)
    init = lambda k, shape: jax.random.uniform(k, shape, jnp.float32, -bound, bound)
    # Per-head (head_size, C) weights stacked along the output axis, then
    # transposed to (in=C, out=H*head_size) for the kernel.
    wq_t = init(keys[1], (NUM_HEADS * HEAD_SIZE, C)).T
    wk_t = init(keys[2], (NUM_HEADS * HEAD_SIZE, C)).T
    wv_t = init(keys[3], (NUM_HEADS * HEAD_SIZE, C)).T
    wp_t = init(keys[4], (C, C)).T
    bp = init(keys[5], (1, C))

    out = multi_head_attention(x, wq_t, wk_t, wv_t, wp_t, bp)
    out = jax.block_until_ready(out)

    ref = _reference(x, wq_t, wk_t, wv_t, wp_t, bp)
    assert out.shape == (B, T, C)
    # bf16 matmul operands + approx reciprocal -> compare with a bf16-sized tolerance.
    assert jnp.allclose(out, ref, atol=2e-2, rtol=2e-2), "mismatch vs reference"

    print("KERNEL_OK")
</pallas_src>

<mosaic_0001>
module attributes {stable_mosaic.version = 11 : i64} {
  func.func @_mha_kernel(%arg0: i32, %arg1: memref<2x8x128xf32, #tpu.memory_space<vmem>>, %arg2: memref<128x384xbf16, #tpu.memory_space<vmem>>, %arg3: memref<128x128xbf16, #tpu.memory_space<vmem>>, %arg4: memref<1x128xf32, #tpu.memory_space<vmem>>, %arg5: memref<2x8x128xf32, #tpu.memory_space<vmem>>) attributes {dimension_semantics = [#tpu.dimension_semantics<parallel>], iteration_bounds = array<i64: 1>, scalar_prefetch = 0 : i64, scratch_operands = 0 : i64, tpu.core_type = #tpu.core_type<tc>, window_params = [{transform_indices = @transform_0, window_bounds = array<i64: 2, 8, 128>}, {pipeline_mode = #tpu.pipeline_mode<synchronous>, transform_indices = @transform_1, window_bounds = array<i64: 128, 384>}, {pipeline_mode = #tpu.pipeline_mode<synchronous>, transform_indices = @transform_2, window_bounds = array<i64: 128, 128>}, {pipeline_mode = #tpu.pipeline_mode<synchronous>, transform_indices = @transform_3, window_bounds = array<i64: 1, 128>}, {transform_indices = @transform_4, window_bounds = array<i64: 2, 8, 128>}]} {
    %c0 = arith.constant 0 : index
    %c0_0 = arith.constant 0 : index
    %c0_1 = arith.constant 0 : index
    %0 = vector.load %arg1[%c0, %c0_0, %c0_1] : memref<2x8x128xf32, #tpu.memory_space<vmem>>, vector<2x8x128xf32>
    %1 = vector.shape_cast %0 : vector<2x8x128xf32> to vector<16x128xf32>
    %2 = arith.truncf %1 : vector<16x128xf32> to vector<16x128xbf16>
    %c0_2 = arith.constant 0 : index
    %c0_3 = arith.constant 0 : index
    %3 = vector.load %arg2[%c0_2, %c0_3] : memref<128x384xbf16, #tpu.memory_space<vmem>>, vector<128x384xbf16>
    %cst = arith.constant dense<0.000000e+00> : vector<16x384xf32>
    %4 = tpu.matmul %2, %3, %cst {dimension_numbers = #tpu.dot_dimension_numbers<[1], [0], [0], [1], [0, 0, 1, 1], [], []>} : vector<16x128xbf16>, vector<128x384xbf16>, vector<16x384xf32> -> vector<16x384xf32>
    %5 = tpu.iota {dimensions = array<i32: 0>} : vector<8x8xi32>
    %6 = tpu.iota {dimensions = array<i32: 1>} : vector<8x8xi32>
    %7 = arith.cmpi sge, %5, %6 : vector<8x8xi32>
    %8 = vector.shape_cast %7 : vector<8x8xi1> to vector<1x8x8xi1>
    %cst_4 = arith.constant 0.000000e+00 : f32
    %9 = vector.broadcast %cst_4 : f32 to vector<16x128xf32>
    %10 = vector.extract_strided_slice %4 {offsets = [0, 0], sizes = [16, 32], strides = [1, 1]} : vector<16x384xf32> to vector<16x32xf32>
    %11 = vector.shape_cast %10 : vector<16x32xf32> to vector<2x8x32xf32>
    %12 = arith.truncf %11 : vector<2x8x32xf32> to vector<2x8x32xbf16>
    %13 = vector.extract_strided_slice %4 {offsets = [0, 128], sizes = [16, 32], strides = [1, 1]} : vector<16x384xf32> to vector<16x32xf32>
    %14 = vector.shape_cast %13 : vector<16x32xf32> to vector<2x8x32xf32>
    %15 = arith.truncf %14 : vector<2x8x32xf32> to vector<2x8x32xbf16>
    %16 = vector.extract_strided_slice %4 {offsets = [0, 256], sizes = [16, 32], strides = [1, 1]} : vector<16x384xf32> to vector<16x32xf32>
    %17 = vector.shape_cast %16 : vector<16x32xf32> to vector<2x8x32xf32>
    %18 = arith.truncf %17 : vector<2x8x32xf32> to vector<2x8x32xbf16>
    "tpu.trace_start"() <{level = 10 : i32, message = "bqd,bkd->bqk"}> : () -> ()
    %cst_5 = arith.constant dense<0.000000e+00> : vector<2x8x8xf32>
    %19 = tpu.matmul %12, %15, %cst_5 {dimension_numbers = #tpu.dot_dimension_numbers<[2], [2], [1], [1], [0, 0, 0, 1, 1, 1], [0], [0]>} : vector<2x8x32xbf16>, vector<2x8x32xbf16>, vector<2x8x8xf32> -> vector<2x8x8xf32>
    %cst_6 = arith.constant 0xFF800000 : f32
    "tpu.trace_stop"() : () -> ()
    %20 = vector.shape_cast %8 : vector<1x8x8xi1> to vector<1x8x8xi1>
    %21 = vector.broadcast %20 : vector<1x8x8xi1> to vector<2x8x8xi1>
    %22 = vector.broadcast %cst_6 : f32 to vector<2x8x8xf32>
    %23 = arith.select %21, %19, %22 : vector<2x8x8xi1>, vector<2x8x8xf32>
    %cst_7 = arith.constant dense<0xFF800000> : vector<2x8xf32>
    %24 = vector.multi_reduction <maximumf>, %23, %cst_7 [2] : vector<2x8x8xf32> to vector<2x8xf32>
    %25 = vector.shape_cast %24 : vector<2x8xf32> to vector<2x8x1xf32>
    %26 = vector.broadcast %25 : vector<2x8x1xf32> to vector<2x8x8xf32>
    %27 = arith.subf %23, %26 : vector<2x8x8xf32>
    %28 = math.exp %27 : vector<2x8x8xf32>
    %cst_8 = arith.constant dense<0.000000e+00> : vector<2x8xf32>
    %29 = vector.multi_reduction <add>, %28, %cst_8 [2] : vector<2x8x8xf32> to vector<2x8xf32>
    %30 = vector.shape_cast %29 : vector<2x8xf32> to vector<2x8x1xf32>
    %31 = tpu.reciprocal %30 {approx = true} : vector<2x8x1xf32> -> vector<2x8x1xf32>
    %32 = arith.truncf %28 : vector<2x8x8xf32> to vector<2x8x8xbf16>
    "tpu.trace_start"() <{level = 10 : i32, message = "bqk,bkd->bqd"}> : () -> ()
    %cst_9 = arith.constant dense<0.000000e+00> : vector<2x8x32xf32>
    %33 = tpu.matmul %32, %18, %cst_9 {dimension_numbers = #tpu.dot_dimension_numbers<[2], [1], [1], [2], [0, 0, 0, 1, 1, 2], [0], [0]>} : vector<2x8x8xbf16>, vector<2x8x32xbf16>, vector<2x8x32xf32> -> vector<2x8x32xf32>
    "tpu.trace_stop"() : () -> ()
    %34 = vector.broadcast %31 : vector<2x8x1xf32> to vector<2x8x32xf32>
    %35 = arith.mulf %33, %34 : vector<2x8x32xf32>
    %36 = vector.shape_cast %35 : vector<2x8x32xf32> to vector<16x32xf32>
    %37 = arith.truncf %36 : vector<16x32xf32> to vector<16x32xbf16>
    %c0_10 = arith.constant 0 : index
    %c0_11 = arith.constant 0 : index
    %38 = vector.load %arg3[%c0_10, %c0_11] : memref<128x128xbf16, #tpu.memory_space<vmem>>, vector<32x128xbf16>
    %cst_12 = arith.constant dense<0.000000e+00> : vector<16x128xf32>
    %39 = tpu.matmul %37, %38, %cst_12 {dimension_numbers = #tpu.dot_dimension_numbers<[1], [0], [0], [1], [0, 0, 1, 1], [], []>} : vector<16x32xbf16>, vector<32x128xbf16>, vector<16x128xf32> -> vector<16x128xf32>
    %40 = arith.addf %9, %39 : vector<16x128xf32>
    %41 = vector.extract_strided_slice %4 {offsets = [0, 32], sizes = [16, 32], strides = [1, 1]} : vector<16x384xf32> to vector<16x32xf32>
    %42 = vector.shape_cast %41 : vector<16x32xf32> to vector<2x8x32xf32>
    %43 = arith.truncf %42 : vector<2x8x32xf32> to vector<2x8x32xbf16>
    %44 = vector.extract_strided_slice %4 {offsets = [0, 160], sizes = [16, 32], strides = [1, 1]} : vector<16x384xf32> to vector<16x32xf32>
    %45 = vector.shape_cast %44 : vector<16x32xf32> to vector<2x8x32xf32>
    %46 = arith.truncf %45 : vector<2x8x32xf32> to vector<2x8x32xbf16>
    %47 = vector.extract_strided_slice %4 {offsets = [0, 288], sizes = [16, 32], strides = [1, 1]} : vector<16x384xf32> to vector<16x32xf32>
    %48 = vector.shape_cast %47 : vector<16x32xf32> to vector<2x8x32xf32>
    %49 = arith.truncf %48 : vector<2x8x32xf32> to vector<2x8x32xbf16>
    "tpu.trace_start"() <{level = 10 : i32, message = "bqd,bkd->bqk"}> : () -> ()
    %cst_13 = arith.constant dense<0.000000e+00> : vector<2x8x8xf32>
    %50 = tpu.matmul %43, %46, %cst_13 {dimension_numbers = #tpu.dot_dimension_numbers<[2], [2], [1], [1], [0, 0, 0, 1, 1, 1], [0], [0]>} : vector<2x8x32xbf16>, vector<2x8x32xbf16>, vector<2x8x8xf32> -> vector<2x8x8xf32>
    %cst_14 = arith.constant 0xFF800000 : f32
    "tpu.trace_stop"() : () -> ()
    %51 = vector.shape_cast %8 : vector<1x8x8xi1> to vector<1x8x8xi1>
    %52 = vector.broadcast %51 : vector<1x8x8xi1> to vector<2x8x8xi1>
    %53 = vector.broadcast %cst_14 : f32 to vector<2x8x8xf32>
    %54 = arith.select %52, %50, %53 : vector<2x8x8xi1>, vector<2x8x8xf32>
    %cst_15 = arith.constant dense<0xFF800000> : vector<2x8xf32>
    %55 = vector.multi_reduction <maximumf>, %54, %cst_15 [2] : vector<2x8x8xf32> to vector<2x8xf32>
    %56 = vector.shape_cast %55 : vector<2x8xf32> to vector<2x8x1xf32>
    %57 = vector.broadcast %56 : vector<2x8x1xf32> to vector<2x8x8xf32>
    %58 = arith.subf %54, %57 : vector<2x8x8xf32>
    %59 = math.exp %58 : vector<2x8x8xf32>
    %cst_16 = arith.constant dense<0.000000e+00> : vector<2x8xf32>
    %60 = vector.multi_reduction <add>, %59, %cst_16 [2] : vector<2x8x8xf32> to vector<2x8xf32>
    %61 = vector.shape_cast %60 : vector<2x8xf32> to vector<2x8x1xf32>
    %62 = tpu.reciprocal %61 {approx = true} : vector<2x8x1xf32> -> vector<2x8x1xf32>
    %63 = arith.truncf %59 : vector<2x8x8xf32> to vector<2x8x8xbf16>
    "tpu.trace_start"() <{level = 10 : i32, message = "bqk,bkd->bqd"}> : () -> ()
    %cst_17 = arith.constant dense<0.000000e+00> : vector<2x8x32xf32>
    %64 = tpu.matmul %63, %49, %cst_17 {dimension_numbers = #tpu.dot_dimension_numbers<[2], [1], [1], [2], [0, 0, 0, 1, 1, 2], [0], [0]>} : vector<2x8x8xbf16>, vector<2x8x32xbf16>, vector<2x8x32xf32> -> vector<2x8x32xf32>
    "tpu.trace_stop"() : () -> ()
    %65 = vector.broadcast %62 : vector<2x8x1xf32> to vector<2x8x32xf32>
    %66 = arith.mulf %64, %65 : vector<2x8x32xf32>
    %67 = vector.shape_cast %66 : vector<2x8x32xf32> to vector<16x32xf32>
    %68 = arith.truncf %67 : vector<16x32xf32> to vector<16x32xbf16>
    %c32 = arith.constant 32 : index
    %c0_18 = arith.constant 0 : index
    %69 = vector.load %arg3[%c32, %c0_18] : memref<128x128xbf16, #tpu.memory_space<vmem>>, vector<32x128xbf16>
    %cst_19 = arith.constant dense<0.000000e+00> : vector<16x128xf32>
    %70 = tpu.matmul %68, %69, %cst_19 {dimension_numbers = #tpu.dot_dimension_numbers<[1], [0], [0], [1], [0, 0, 1, 1], [], []>} : vector<16x32xbf16>, vector<32x128xbf16>, vector<16x128xf32> -> vector<16x128xf32>
    %71 = arith.addf %40, %70 : vector<16x128xf32>
    %72 = vector.extract_strided_slice %4 {offsets = [0, 64], sizes = [16, 32], strides = [1, 1]} : vector<16x384xf32> to vector<16x32xf32>
    %73 = vector.shape_cast %72 : vector<16x32xf32> to vector<2x8x32xf32>
    %74 = arith.truncf %73 : vector<2x8x32xf32> to vector<2x8x32xbf16>
    %75 = vector.extract_strided_slice %4 {offsets = [0, 192], sizes = [16, 32], strides = [1, 1]} : vector<16x384xf32> to vector<16x32xf32>
    %76 = vector.shape_cast %75 : vector<16x32xf32> to vector<2x8x32xf32>
    %77 = arith.truncf %76 : vector<2x8x32xf32> to vector<2x8x32xbf16>
    %78 = vector.extract_strided_slice %4 {offsets = [0, 320], sizes = [16, 32], strides = [1, 1]} : vector<16x384xf32> to vector<16x32xf32>
    %79 = vector.shape_cast %78 : vector<16x32xf32> to vector<2x8x32xf32>
    %80 = arith.truncf %79 : vector<2x8x32xf32> to vector<2x8x32xbf16>
    "tpu.trace_start"() <{level = 10 : i32, message = "bqd,bkd->bqk"}> : () -> ()
    %cst_20 = arith.constant dense<0.000000e+00> : vector<2x8x8xf32>
    %81 = tpu.matmul %74, %77, %cst_20 {dimension_numbers = #tpu.dot_dimension_numbers<[2], [2], [1], [1], [0, 0, 0, 1, 1, 1], [0], [0]>} : vector<2x8x32xbf16>, vector<2x8x32xbf16>, vector<2x8x8xf32> -> vector<2x8x8xf32>
    %cst_21 = arith.constant 0xFF800000 : f32
    "tpu.trace_stop"() : () -> ()
    %82 = vector.shape_cast %8 : vector<1x8x8xi1> to vector<1x8x8xi1>
    %83 = vector.broadcast %82 : vector<1x8x8xi1> to vector<2x8x8xi1>
    %84 = vector.broadcast %cst_21 : f32 to vector<2x8x8xf32>
    %85 = arith.select %83, %81, %84 : vector<2x8x8xi1>, vector<2x8x8xf32>
    %cst_22 = arith.constant dense<0xFF800000> : vector<2x8xf32>
    %86 = vector.multi_reduction <maximumf>, %85, %cst_22 [2] : vector<2x8x8xf32> to vector<2x8xf32>
    %87 = vector.shape_cast %86 : vector<2x8xf32> to vector<2x8x1xf32>
    %88 = vector.broadcast %87 : vector<2x8x1xf32> to vector<2x8x8xf32>
    %89 = arith.subf %85, %88 : vector<2x8x8xf32>
    %90 = math.exp %89 : vector<2x8x8xf32>
    %cst_23 = arith.constant dense<0.000000e+00> : vector<2x8xf32>
    %91 = vector.multi_reduction <add>, %90, %cst_23 [2] : vector<2x8x8xf32> to vector<2x8xf32>
    %92 = vector.shape_cast %91 : vector<2x8xf32> to vector<2x8x1xf32>
    %93 = tpu.reciprocal %92 {approx = true} : vector<2x8x1xf32> -> vector<2x8x1xf32>
    %94 = arith.truncf %90 : vector<2x8x8xf32> to vector<2x8x8xbf16>
    "tpu.trace_start"() <{level = 10 : i32, message = "bqk,bkd->bqd"}> : () -> ()
    %cst_24 = arith.constant dense<0.000000e+00> : vector<2x8x32xf32>
    %95 = tpu.matmul %94, %80, %cst_24 {dimension_numbers = #tpu.dot_dimension_numbers<[2], [1], [1], [2], [0, 0, 0, 1, 1, 2], [0], [0]>} : vector<2x8x8xbf16>, vector<2x8x32xbf16>, vector<2x8x32xf32> -> vector<2x8x32xf32>
    "tpu.trace_stop"() : () -> ()
    %96 = vector.broadcast %93 : vector<2x8x1xf32> to vector<2x8x32xf32>
    %97 = arith.mulf %95, %96 : vector<2x8x32xf32>
    %98 = vector.shape_cast %97 : vector<2x8x32xf32> to vector<16x32xf32>
    %99 = arith.truncf %98 : vector<16x32xf32> to vector<16x32xbf16>
    %c64 = arith.constant 64 : index
    %c0_25 = arith.constant 0 : index
    %100 = vector.load %arg3[%c64, %c0_25] : memref<128x128xbf16, #tpu.memory_space<vmem>>, vector<32x128xbf16>
    %cst_26 = arith.constant dense<0.000000e+00> : vector<16x128xf32>
    %101 = tpu.matmul %99, %100, %cst_26 {dimension_numbers = #tpu.dot_dimension_numbers<[1], [0], [0], [1], [0, 0, 1, 1], [], []>} : vector<16x32xbf16>, vector<32x128xbf16>, vector<16x128xf32> -> vector<16x128xf32>
    %102 = arith.addf %71, %101 : vector<16x128xf32>
    %103 = vector.extract_strided_slice %4 {offsets = [0, 96], sizes = [16, 32], strides = [1, 1]} : vector<16x384xf32> to vector<16x32xf32>
    %104 = vector.shape_cast %103 : vector<16x32xf32> to vector<2x8x32xf32>
    %105 = arith.truncf %104 : vector<2x8x32xf32> to vector<2x8x32xbf16>
    %106 = vector.extract_strided_slice %4 {offsets = [0, 224], sizes = [16, 32], strides = [1, 1]} : vector<16x384xf32> to vector<16x32xf32>
    %107 = vector.shape_cast %106 : vector<16x32xf32> to vector<2x8x32xf32>
    %108 = arith.truncf %107 : vector<2x8x32xf32> to vector<2x8x32xbf16>
    %109 = vector.extract_strided_slice %4 {offsets = [0, 352], sizes = [16, 32], strides = [1, 1]} : vector<16x384xf32> to vector<16x32xf32>
    %110 = vector.shape_cast %109 : vector<16x32xf32> to vector<2x8x32xf32>
    %111 = arith.truncf %110 : vector<2x8x32xf32> to vector<2x8x32xbf16>
    "tpu.trace_start"() <{level = 10 : i32, message = "bqd,bkd->bqk"}> : () -> ()
    %cst_27 = arith.constant dense<0.000000e+00> : vector<2x8x8xf32>
    %112 = tpu.matmul %105, %108, %cst_27 {dimension_numbers = #tpu.dot_dimension_numbers<[2], [2], [1], [1], [0, 0, 0, 1, 1, 1], [0], [0]>} : vector<2x8x32xbf16>, vector<2x8x32xbf16>, vector<2x8x8xf32> -> vector<2x8x8xf32>
    %cst_28 = arith.constant 0xFF800000 : f32
    "tpu.trace_stop"() : () -> ()
    %113 = vector.shape_cast %8 : vector<1x8x8xi1> to vector<1x8x8xi1>
    %114 = vector.broadcast %113 : vector<1x8x8xi1> to vector<2x8x8xi1>
    %115 = vector.broadcast %cst_28 : f32 to vector<2x8x8xf32>
    %116 = arith.select %114, %112, %115 : vector<2x8x8xi1>, vector<2x8x8xf32>
    %cst_29 = arith.constant dense<0xFF800000> : vector<2x8xf32>
    %117 = vector.multi_reduction <maximumf>, %116, %cst_29 [2] : vector<2x8x8xf32> to vector<2x8xf32>
    %118 = vector.shape_cast %117 : vector<2x8xf32> to vector<2x8x1xf32>
    %119 = vector.broadcast %118 : vector<2x8x1xf32> to vector<2x8x8xf32>
    %120 = arith.subf %116, %119 : vector<2x8x8xf32>
    %121 = math.exp %120 : vector<2x8x8xf32>
    %cst_30 = arith.constant dense<0.000000e+00> : vector<2x8xf32>
    %122 = vector.multi_reduction <add>, %121, %cst_30 [2] : vector<2x8x8xf32> to vector<2x8xf32>
    %123 = vector.shape_cast %122 : vector<2x8xf32> to vector<2x8x1xf32>
    %124 = tpu.reciprocal %123 {approx = true} : vector<2x8x1xf32> -> vector<2x8x1xf32>
    %125 = arith.truncf %121 : vector<2x8x8xf32> to vector<2x8x8xbf16>
    "tpu.trace_start"() <{level = 10 : i32, message = "bqk,bkd->bqd"}> : () -> ()
    %cst_31 = arith.constant dense<0.000000e+00> : vector<2x8x32xf32>
    %126 = tpu.matmul %125, %111, %cst_31 {dimension_numbers = #tpu.dot_dimension_numbers<[2], [1], [1], [2], [0, 0, 0, 1, 1, 2], [0], [0]>} : vector<2x8x8xbf16>, vector<2x8x32xbf16>, vector<2x8x32xf32> -> vector<2x8x32xf32>
    "tpu.trace_stop"() : () -> ()
    %127 = vector.broadcast %124 : vector<2x8x1xf32> to vector<2x8x32xf32>
    %128 = arith.mulf %126, %127 : vector<2x8x32xf32>
    %129 = vector.shape_cast %128 : vector<2x8x32xf32> to vector<16x32xf32>
    %130 = arith.truncf %129 : vector<16x32xf32> to vector<16x32xbf16>
    %c96 = arith.constant 96 : index
    %c0_32 = arith.constant 0 : index
    %131 = vector.load %arg3[%c96, %c0_32] : memref<128x128xbf16, #tpu.memory_space<vmem>>, vector<32x128xbf16>
    %cst_33 = arith.constant dense<0.000000e+00> : vector<16x128xf32>
    %132 = tpu.matmul %130, %131, %cst_33 {dimension_numbers = #tpu.dot_dimension_numbers<[1], [0], [0], [1], [0, 0, 1, 1], [], []>} : vector<16x32xbf16>, vector<32x128xbf16>, vector<16x128xf32> -> vector<16x128xf32>
    %133 = arith.addf %102, %132 : vector<16x128xf32>
    %c0_34 = arith.constant 0 : index
    %c0_35 = arith.constant 0 : index
    %134 = vector.load %arg4[%c0_34, %c0_35] : memref<1x128xf32, #tpu.memory_space<vmem>>, vector<1x128xf32>
    %135 = vector.broadcast %134 : vector<1x128xf32> to vector<16x128xf32>
    %136 = arith.addf %133, %135 : vector<16x128xf32>
    %137 = vector.shape_cast %136 : vector<16x128xf32> to vector<2x8x128xf32>
    %c0_36 = arith.constant 0 : index
    %c0_37 = arith.constant 0 : index
    %c0_38 = arith.constant 0 : index
    %138 = vector.load %arg5[%c0_36, %c0_37, %c0_38] : memref<2x8x128xf32, #tpu.memory_space<vmem>>, vector<2x8x128xf32>
    tpu.vector_store %arg5[%c0_36, %c0_37, %c0_38], %137 {strides = array<i32>} : memref<2x8x128xf32, #tpu.memory_space<vmem>>, vector<2x8x128xf32>,
    return
  }
  func.func @transform_0(%arg0: i32) -> (i32, i32, i32) {
    %c0_i32 = arith.constant 0 : i32
    %c0_i32_0 = arith.constant 0 : i32
    %c0_i32_1 = arith.constant 0 : i32
    return %arg0, %c0_i32, %c0_i32_0 : i32, i32, i32
  }
  func.func @transform_1(%arg0: i32) -> (i32, i32) {
    %c0_i32 = arith.constant 0 : i32
    %c0_i32_0 = arith.constant 0 : i32
    %c0_i32_1 = arith.constant 0 : i32
    return %c0_i32, %c0_i32_0 : i32, i32
  }
  func.func @transform_2(%arg0: i32) -> (i32, i32) {
    %c0_i32 = arith.constant 0 : i32
    %c0_i32_0 = arith.constant 0 : i32
    %c0_i32_1 = arith.constant 0 : i32
    return %c0_i32, %c0_i32_0 : i32, i32
  }
  func.func @transform_3(%arg0: i32) -> (i32, i32) {
    %c0_i32 = arith.constant 0 : i32
    %c0_i32_0 = arith.constant 0 : i32
    %c0_i32_1 = arith.constant 0 : i32
    return %c0_i32, %c0_i32_0 : i32, i32
  }
  func.func @transform_4(%arg0: i32) -> (i32, i32, i32) {
    %c0_i32 = arith.constant 0 : i32
    %c0_i32_0 = arith.constant 0 : i32
    %c0_i32_1 = arith.constant 0 : i32
    return %arg0, %c0_i32, %c0_i32_0 : i32, i32, i32
  }
}

</mosaic_0001>

<llo_original>
// kernel: multi_head_attention.1
$region0: #{multi_head_attention.1}
  #allocation0 [shape = 'u32[]', space=smem, size = 0x4, offset = 0x4, fixed_abs, tag = 'smem constant byte address 0x4 - core index']
  #allocation1 [shape = 'u32[144,128]{1,0:T(1,128)}', space=vmem, size = 0x12000, scoped, tag = 'internal scratch']
  %s0 = inlined_call_operand.vmem [shape: f32[2,8,128], index: 0, kind: input, shape index: {}]
  %s1 = inlined_call_operand.vmem [shape: bf16[128,384], index: 1, kind: input, shape index: {}]
  %s2 = inlined_call_operand.vmem [shape: bf16[128,128], index: 2, kind: input, shape index: {}]
  %s3 = inlined_call_operand.vmem [shape: f32[1,128], index: 3, kind: input, shape index: {}]
  %s4 = inlined_call_operand.hbm [shape: f32[2,8,128], index: 4, kind: output, shape index: {}]
  %s5 = sld [smem:[#allocation0]]
  $region26: #{multi_head_attention.1} parent=0
    _
  %s7 = ssub.s32 1, %s5
  %s8 = scalar_select 0, %s7, %s5
  $region1: #{multi_head_attention.1} parent=0
    #allocation2 [shape = 'u8[8192]{0}', space=vmem, size = 0x2000, scoped, tag = 'output window, operand 0, single buffered']
    #allocation3 [shape = 's32[1]{0}', space=sflag, size = 0x4, scoped, tag = 'scoped memory for multi_head_attention.1']
    %9 = vsyncpa [#allocation3], 0
    // Predicated region
    $region2: #{multi_head_attention.1} parent=1 // pred_check
      _
    $region3: #{multi_head_attention.1} parent=1 // pred_check_branch
      %11 = sbr.rel (0) target = $region5
    $region4: #{multi_head_attention.1} parent=1 // pred_region
      _
    $region5: #{multi_head_attention.1} parent=1 // pred_fallthru
      _
    // Predicated region
    $region6: #{multi_head_attention.1} parent=1 // pred_check
      _
    $region7: #{multi_head_attention.1} parent=1 // pred_check_branch
      %13 = sbr.rel (0) target = $region9
    $region8: #{multi_head_attention.1} parent=1 // pred_region
      _
    $region9: #{multi_head_attention.1} parent=1 // pred_fallthru
      _
    // Predicated region
    $region10: #{multi_head_attention.1} parent=1 // pred_check
      _
    $region11: #{multi_head_attention.1} parent=1 // pred_check_branch
      %15 = sbr.rel (0) target = $region13
    $region12: #{multi_head_attention.1} parent=1 // pred_region
      _
    $region13: #{multi_head_attention.1} parent=1 // pred_fallthru
      _
    // Predicated region
    $region14: #{multi_head_attention.1} parent=1 // pred_check
      _
    $region15: #{multi_head_attention.1} parent=1 // pred_check_branch
      %17 = sbr.rel (0) target = $region17
    $region16: #{multi_head_attention.1} parent=1 // pred_region
      _
    $region17: #{multi_head_attention.1} parent=1 // pred_fallthru
      _
    %v19 = vld [vmem:[%s0] sm:$0xff]
    %v20 = vld [vmem:[%s0 + $0x8] sm:$0xff]
    %v21 = vpack.c.bf16 %v20, %v19
    %v22 = vld [vmem:[%s1] sm:$0xff]
    %v23 = vld [vmem:[%s1 + $0x8] sm:$0xf]
    %v24 = vld [vmem:[%s1 + $0xc] sm:$0xff]
    %v25 = vld [vmem:[%s1 + $0x14] sm:$0xf]
    %v26 = vld [vmem:[%s1 + $0x18] sm:$0xff]
    %v27 = vld [vmem:[%s1 + $0x20] sm:$0xf]
    %v28 = vld [vmem:[%s1 + $0x24] sm:$0xff]
    %v29 = vld [vmem:[%s1 + $0x2c] sm:$0xf]
    %v30 = vld [vmem:[%s1 + $0x30] sm:$0xff]
    %v31 = vld [vmem:[%s1 + $0x38] sm:$0xf]
    %v32 = vld [vmem:[%s1 + $0x3c] sm:$0xff]
    %v33 = vld [vmem:[%s1 + $0x44] sm:$0xf]
    %v34 = vld [vmem:[%s1 + $0x48] sm:$0xff]
    %v35 = vld [vmem:[%s1 + $0x50] sm:$0xf]
    %v36 = vld [vmem:[%s1 + $0x54] sm:$0xff]
    %v37 = vld [vmem:[%s1 + $0x5c] sm:$0xf]
    %v38 = vld [vmem:[%s1 + $0x60] sm:$0xff]
    %v39 = vld [vmem:[%s1 + $0x68] sm:$0xf]
    %v40 = vld [vmem:[%s1 + $0x6c] sm:$0xff]
    %v41 = vld [vmem:[%s1 + $0x74] sm:$0xf]
    %v42 = vld [vmem:[%s1 + $0x78] sm:$0xff]
    %v43 = vld [vmem:[%s1 + $0x80] sm:$0xf]
    %v44 = vld [vmem:[%s1 + $0x84] sm:$0xff]
    %v45 = vld [vmem:[%s1 + $0x8c] sm:$0xf]
    %v46 = vld [vmem:[%s1 + $0x90] sm:$0xff]
    %v47 = vld [vmem:[%s1 + $0x98] sm:$0xf]
    %v48 = vld [vmem:[%s1 + $0x9c] sm:$0xff]
    %v49 = vld [vmem:[%s1 + $0xa4] sm:$0xf]
    %v50 = vld [vmem:[%s1 + $0xa8] sm:$0xff]
    %v51 = vld [vmem:[%s1 + $0xb0] sm:$0xf]
    %v52 = vld [vmem:[%s1 + $0xb4] sm:$0xff]
    %v53 = vld [vmem:[%s1 + $0xbc] sm:$0xf]
    %v86 = vunpack.c.l.b16 %v22
    %v87 = vunpack.c.h.b16 %v22
    %v88 = vunpack.c.l.b16 %v23
    %v89 = vunpack.c.l.b16 %v24
    %v90 = vunpack.c.h.b16 %v24
    %v91 = vunpack.c.l.b16 %v25
    %v92 = vunpack.c.l.b16 %v26
    %v93 = vunpack.c.h.b16 %v26
    %v94 = vunpack.c.l.b16 %v27
    %v95 = vunpack.c.l.b16 %v28
    %v96 = vunpack.c.h.b16 %v28
    %v97 = vunpack.c.l.b16 %v29
    %v98 = vunpack.c.l.b16 %v30
    %v99 = vunpack.c.h.b16 %v30
    %v100 = vunpack.c.l.b16 %v31
    %v101 = vunpack.c.l.b16 %v32
    %v102 = vunpack.c.h.b16 %v32
    %v103 = vunpack.c.l.b16 %v33
    %v104 = vunpack.c.l.b16 %v34
    %v105 = vunpack.c.h.b16 %v34
    %v106 = vunpack.c.l.b16 %v35
    %v107 = vunpack.c.l.b16 %v36
    %v108 = vunpack.c.h.b16 %v36
    %v109 = vunpack.c.l.b16 %v37
    %v110 = vunpack.c.l.b16 %v38
    %v111 = vunpack.c.h.b16 %v38
    %v112 = vunpack.c.l.b16 %v39
    %v113 = vunpack.c.l.b16 %v40
    %v114 = vunpack.c.h.b16 %v40
    %v115 = vunpack.c.l.b16 %v41
    %v116 = vunpack.c.l.b16 %v42
    %v117 = vunpack.c.h.b16 %v42
    %v118 = vunpack.c.l.b16 %v43
    %v119 = vunpack.c.l.b16 %v44
    %v120 = vunpack.c.h.b16 %v44
    %v121 = vunpack.c.l.b16 %v45
    %v122 = vunpack.c.l.b16 %v46
    %v123 = vunpack.c.h.b16 %v46
    %v124 = vunpack.c.l.b16 %v47
    %v125 = vunpack.c.l.b16 %v48
    %v126 = vunpack.c.h.b16 %v48
    %v127 = vunpack.c.l.b16 %v49
    %v128 = vunpack.c.l.b16 %v50
    %v129 = vunpack.c.h.b16 %v50
    %v130 = vunpack.c.l.b16 %v51
    %v131 = vunpack.c.l.b16 %v52
    %v132 = vunpack.c.h.b16 %v52
    %v133 = vunpack.c.l.b16 %v53
    %v134 = vpack.c.b16 %v89, %v86
    %v135 = vpack.c.b16 %v90, %v87
    %v136 = vpack.c.b16 %v91, %v88
    %v137 = vpack.c.b16 %v95, %v92
    %v138 = vpack.c.b16 %v96, %v93
    %v139 = vpack.c.b16 %v97, %v94
    %v140 = vpack.c.b16 %v101, %v98
    %v141 = vpack.c.b16 %v102, %v99
    %v142 = vpack.c.b16 %v103, %v100
    %v143 = vpack.c.b16 %v107, %v104
    %v144 = vpack.c.b16 %v108, %v105
    %v145 = vpack.c.b16 %v109, %v106
    %v146 = vpack.c.b16 %v113, %v110
    %v147 = vpack.c.b16 %v114, %v111
    %v148 = vpack.c.b16 %v115, %v112
    %v149 = vpack.c.b16 %v119, %v116
    %v150 = vpack.c.b16 %v120, %v117
    %v151 = vpack.c.b16 %v121, %v118
    %v152 = vpack.c.b16 %v125, %v122
    %v153 = vpack.c.b16 %v126, %v123
    %v154 = vpack.c.b16 %v127, %v124
    %v155 = vpack.c.b16 %v131, %v128
    %v156 = vpack.c.b16 %v132, %v129
    %v157 = vpack.c.b16 %v133, %v130
    %182 = vmatprep.subr.bf16.mxu0 %v156
    %183 = vmatpush1.bf16.msra.mxu0 %v155
    %184 = vmatprep.subr.bf16.mxu0 %v153
    %185 = vmatpush1.bf16.msra.mxu0 %v152
    %186 = vmatprep.subr.bf16.mxu0 %v150
    %187 = vmatpush1.bf16.msra.mxu0 %v149
    %188 = vmatprep.subr.bf16.mxu0 %v147
    %189 = vmatpush1.bf16.msra.mxu0 %v146
    %190 = vmatprep.subr.bf16.mxu0 %v144
    %191 = vmatpush1.bf16.msra.mxu0 %v143
    %192 = vmatprep.subr.bf16.mxu0 %v141
    %193 = vmatpush1.bf16.msra.mxu0 %v140
    %194 = vmatprep.subr.bf16.mxu0 %v138
    %195 = vmatpush1.bf16.msra.mxu0 %v137
    %196 = vmatprep.subr.bf16.mxu0 %v135
    %197 = vmatpush1.bf16.msra.mxu0 %v134
    %198 = vmatprep.subr.bf16.mxu0 0
    %199 = vmatpush2.bf16.msra.mxu0 0
    %200 = vmatprep.subr.bf16.mxu0 0
    %201 = vmatpush2.bf16.msra.mxu0 0
    %202 = vmatprep.subr.bf16.mxu0 0
    %203 = vmatpush2.bf16.msra.mxu0 0
    %204 = vmatprep.subr.bf16.mxu0 0
    %205 = vmatpush2.bf16.msra.mxu0 0
    %206 = vmatprep.subr.bf16.mxu0 0
    %207 = vmatpush2.bf16.msra.mxu0 0
    %208 = vmatprep.subr.bf16.mxu0 0
    %209 = vmatpush2.bf16.msra.mxu0 0
    %210 = vmatprep.subr.bf16.mxu0 0
    %211 = vmatpush2.bf16.msra.mxu0 0
    %212 = vmatprep.subr.bf16.mxu0 0
    %213 = vmatpush2.bf16.msra.mxu0 0
    %214 = vmatprep.mubr.bf16.mxu0 0
    %215 = vmatmul.mubr.bf16.gmra.mxu0 %v21
    %v216 = vpop.f32.mrf.mxu0
    %v217 = vadd.f32 0.0, %v216
    %v218 = vpop.f32.mrf.mxu0
    %v219 = vadd.f32 0.0, %v218
    %v220 = vpop.f32.mrf.mxu0
    %v221 = vadd.f32 0.0, %v220
    %v222 = vpop.f32.mrf.mxu0
    %v223 = vadd.f32 0.0, %v222
    %224 = vdwg.mxu0
    %225 = vmatprep.subr.bf16.mxu0 0
    %226 = vmatpush1.bf16.msra.mxu0 %v157
    %227 = vmatprep.subr.bf16.mxu0 0
    %228 = vmatpush1.bf16.msra.mxu0 %v154
    %229 = vmatprep.subr.bf16.mxu0 0
    %230 = vmatpush1.bf16.msra.mxu0 %v151
    %231 = vmatprep.subr.bf16.mxu0 0
    %232 = vmatpush1.bf16.msra.mxu0 %v148
    %233 = vmatprep.subr.bf16.mxu0 0
    %234 = vmatpush1.bf16.msra.mxu0 %v145
    %235 = vmatprep.subr.bf16.mxu0 0
    %236 = vmatpush1.bf16.msra.mxu0 %v142
    %237 = vmatprep.subr.bf16.mxu0 0
    %238 = vmatpush1.bf16.msra.mxu0 %v139
    %239 = vmatprep.subr.bf16.mxu0 0
    %240 = vmatpush1.bf16.msra.mxu0 %v136
    %241 = vmatprep.subr.bf16.mxu0 0
    %242 = vmatpush2.bf16.msra.mxu0 0
    %243 = vmatprep.subr.bf16.mxu0 0
    %244 = vmatpush2.bf16.msra.mxu0 0
    %245 = vmatprep.subr.bf16.mxu0 0
    %246 = vmatpush2.bf16.msra.mxu0 0
    %247 = vmatprep.subr.bf16.mxu0 0
    %248 = vmatpush2.bf16.msra.mxu0 0
    %249 = vmatprep.subr.bf16.mxu0 0
    %250 = vmatpush2.bf16.msra.mxu0 0
    %251 = vmatprep.subr.bf16.mxu0 0
    %252 = vmatpush2.bf16.msra.mxu0 0
    %253 = vmatprep.subr.bf16.mxu0 0
    %254 = vmatpush2.bf16.msra.mxu0 0
    %255 = vmatprep.subr.bf16.mxu0 0
    %256 = vmatpush2.bf16.msra.mxu0 0
    %257 = vmatprep.mubr.bf16.mxu0 0
    %258 = vmatmul.mubr.bf16.gmra.mxu0 %v21
    %v259 = vpop.f32.mrf.mxu0
    %v260 = vadd.f32 0.0, %v259
    %v261 = vpop.f32.mrf.mxu0
    %v262 = vpop.f32.mrf.mxu0
    %v263 = vadd.f32 0.0, %v262
    %v264 = vpop.f32.mrf.mxu0
    %265 = vdwg.mxu0
    %v266 = vlaneseq
    %v267 = vshrl.u32 %v266, 7
    %v268 = vlaneseq
    %v269 = vand.u32 %v268, 127
    %vm270 = vcmp.ge.s32.totalorder %v267, %v269
    %v271 = vpack.c.bf16 %v217, %v217
    %v272 = vpack.c.bf16 %v221, %v221
    %v273 = vpack.c.bf16 %v219, %v219
    %v274 = vpack.c.bf16 %v223, %v223
    %v275 = vpack.c.bf16 %v260, %v260
    %v276 = vpack.c.bf16 %v263, %v263
    %vm277 = vcmask 261120
    %v279 = vsel %vm277, %v271, 0
    %v282 = vsel %vm277, %v273, 0
    %284 = vmatprep.subr.bf16.mxu0 0
    %285 = vmatpush1.bf16.xpose.msra.mxu0 0
    %286 = vmatprep.subr.bf16.mxu0 0
    %287 = vmatpush1.bf16.xpose.msra.mxu0 0
    %288 = vmatprep.subr.bf16.mxu0 0
    %289 = vmatpush1.bf16.xpose.msra.mxu0 0
    %290 = vmatprep.subr.bf16.mxu0 0
    %291 = vmatpush1.bf16.xpose.msra.mxu0 0
    %292 = vmatprep.subr.bf16.mxu0 0
    %293 = vmatpush1.bf16.xpose.msra.mxu0 0
    %294 = vmatprep.subr.bf16.mxu0 0
    %295 = vmatpush1.bf16.xpose.msra.mxu0 0
    %296 = vmatprep.subr.bf16.mxu0 0
    %297 = vmatpush1.bf16.xpose.msra.mxu0 0
    %298 = vmatprep.subr.bf16.mxu0 0
    %299 = vmatpush1.bf16.xpose.msra.mxu0 %v282
    %300 = vmatprep.subr.bf16.mxu0 0
    %301 = vmatpush2.bf16.xpose.msra.mxu0 0
    %302 = vmatprep.subr.bf16.mxu0 0
    %303 = vmatpush2.bf16.xpose.msra.mxu0 0
    %304 = vmatprep.subr.bf16.mxu0 0
    %305 = vmatpush2.bf16.xpose.msra.mxu0 0
    %306 = vmatprep.subr.bf16.mxu0 0
    %307 = vmatpush2.bf16.xpose.msra.mxu0 0
    %308 = vmatprep.subr.bf16.mxu0 0
    %309 = vmatpush2.bf16.xpose.msra.mxu0 0
    %310 = vmatprep.subr.bf16.mxu0 0
    %311 = vmatpush2.bf16.xpose.msra.mxu0 0
    %312 = vmatprep.subr.bf16.mxu0 0
    %313 = vmatpush2.bf16.xpose.msra.mxu0 0
    %314 = vmatprep.subr.bf16.mxu0 0
    %315 = vmatpush2.bf16.xpose.msra.mxu0 0
    %316 = vmatprep.mubr.bf16.mxu0 0
    %317 = vmatmul.mubr.bf16.gmra.mxu0 %v279
    %v318 = vpop.f32.mrf.mxu0
    %v319 = vadd.f32 0.0, %v318
    %v320 = vpop.f32.mrf.mxu0
    %v321 = vpop.f32.mrf.mxu0
    %v322 = vpop.f32.mrf.mxu0
    %323 = vdwg.mxu0
    %v325 = vsel %vm277, %v272, 0
    %v328 = vsel %vm277, %v274, 0
    %330 = vmatprep.subr.bf16.mxu0 0
    %331 = vmatpush1.bf16.xpose.msra.mxu0 0
    %332 = vmatprep.subr.bf16.mxu0 0
    %333 = vmatpush1.bf16.xpose.msra.mxu0 0
    %334 = vmatprep.subr.bf16.mxu0 0
    %335 = vmatpush1.bf16.xpose.msra.mxu0 0
    %336 = vmatprep.subr.bf16.mxu0 0
    %337 = vmatpush1.bf16.xpose.msra.mxu0 0
    %338 = vmatprep.subr.bf16.mxu0 0
    %339 = vmatpush1.bf16.xpose.msra.mxu0 0
    %340 = vmatprep.subr.bf16.mxu0 0
    %341 = vmatpush1.bf16.xpose.msra.mxu0 0
    %342 = vmatprep.subr.bf16.mxu0 0
    %343 = vmatpush1.bf16.xpose.msra.mxu0 0
    %344 = vmatprep.subr.bf16.mxu0 0
    %345 = vmatpush1.bf16.xpose.msra.mxu0 %v328
    %346 = vmatprep.subr.bf16.mxu0 0
    %347 = vmatpush2.bf16.xpose.msra.mxu0 0
    %348 = vmatprep.subr.bf16.mxu0 0
    %349 = vmatpush2.bf16.xpose.msra.mxu0 0
    %350 = vmatprep.subr.bf16.mxu0 0
    %351 = vmatpush2.bf16.xpose.msra.mxu0 0
    %352 = vmatprep.subr.bf16.mxu0 0
    %353 = vmatpush2.bf16.xpose.msra.mxu0 0
    %354 = vmatprep.subr.bf16.mxu0 0
    %355 = vmatpush2.bf16.xpose.msra.mxu0 0
    %356 = vmatprep.subr.bf16.mxu0 0
    %357 = vmatpush2.bf16.xpose.msra.mxu0 0
    %358 = vmatprep.subr.bf16.mxu0 0
    %359 = vmatpush2.bf16.xpose.msra.mxu0 0
    %360 = vmatprep.subr.bf16.mxu0 0
    %361 = vmatpush2.bf16.xpose.msra.mxu0 0
    %362 = vmatprep.mubr.bf16.mxu0 0
    %363 = vmatmul.mubr.bf16.gmra.mxu0 %v325
    %v364 = vpop.f32.mrf.mxu0
    %v365 = vadd.f32 0.0, %v364
    %v366 = vpop.f32.mrf.mxu0
    %v367 = vpop.f32.mrf.mxu0
    %v368 = vpop.f32.mrf.mxu0
    %369 = vdwg.mxu0
    %v370 = vsel %vm270, 1, 0
    %vm371 = vcmp.eq.s32.totalorder %v370, 1
    %v372 = vsel %vm371, %v319, -inf
    %v373 = vsel %vm371, %v365, -inf
    %vm374 = vcmask 64512
    %v375 = vsel %vm374, %v372, -inf
    %376 = vmax.xlane.f32.xlu0 %v375
    %v377 = vpop.xlane.xlu0 %376
    %v378 = vsel %vm374, %v373, -inf
    %379 = vmax.xlane.f32.xlu0 %v378
    %v380 = vpop.xlane.xlu0 %379
    %v381 = vsub.f32 %v372, %v377
    %v382 = vsub.f32 %v373, %v380
    %v383 = vmul.f32 %v381, 1.442695
    %v384 = vpow.pop %v383
    %v385 = vmul.f32 %v382, 1.442695
    %v386 = vpow.pop %v385
    %v387 = vsel %vm374, %v384, 0.0
    %388 = vadd.xlane.f32.xlu0 %v387
    %v389 = vpop.xlane.xlu0 %388
    %v390 = vsel %vm374, %v386, 0.0
    %391 = vadd.xlane.f32.xlu0 %v390
    %v392 = vpop.xlane.xlu0 %391
    %v393 = vrcp.pop %v389
    %v394 = vrcp.pop %v392
    %v395 = vpack.c.bf16 %v384, %v384
    %v396 = vpack.c.bf16 %v386, %v386
    %v398 = vsel %vm374, %v395, 0
    %vm400 = vcmask 1043456
    %v402 = vsel %vm400, %v275, 0
    %404 = vmatprep.subr.bf16.mxu0 0
    %405 = vmatpush1.bf16.msra.mxu0 0
    %406 = vmatprep.subr.bf16.mxu0 0
    %407 = vmatpush1.bf16.msra.mxu0 0
    %408 = vmatprep.subr.bf16.mxu0 0
    %409 = vmatpush1.bf16.msra.mxu0 0
    %410 = vmatprep.subr.bf16.mxu0 0
    %411 = vmatpush1.bf16.msra.mxu0 0
    %412 = vmatprep.subr.bf16.mxu0 0
    %413 = vmatpush1.bf16.msra.mxu0 0
    %414 = vmatprep.subr.bf16.mxu0 0
    %415 = vmatpush1.bf16.msra.mxu0 0
    %416 = vmatprep.subr.bf16.mxu0 0
    %417 = vmatpush1.bf16.msra.mxu0 0
    %418 = vmatprep.subr.bf16.mxu0 0
    %419 = vmatpush1.bf16.msra.mxu0 %v402
    %420 = vmatprep.subr.bf16.mxu0 0
    %421 = vmatpush2.bf16.msra.mxu0 0
    %422 = vmatprep.subr.bf16.mxu0 0
    %423 = vmatpush2.bf16.msra.mxu0 0
    %424 = vmatprep.subr.bf16.mxu0 0
    %425 = vmatpush2.bf16.msra.mxu0 0
    %426 = vmatprep.subr.bf16.mxu0 0
    %427 = vmatpush2.bf16.msra.mxu0 0
    %428 = vmatprep.subr.bf16.mxu0 0
    %429 = vmatpush2.bf16.msra.mxu0 0
    %430 = vmatprep.subr.bf16.mxu0 0
    %431 = vmatpush2.bf16.msra.mxu0 0
    %432 = vmatprep.subr.bf16.mxu0 0
    %433 = vmatpush2.bf16.msra.mxu0 0
    %434 = vmatprep.subr.bf16.mxu0 0
    %435 = vmatpush2.bf16.msra.mxu0 0
    %436 = vmatprep.mubr.bf16.mxu0 0
    %437 = vmatmul.mubr.bf16.gmra.mxu0 %v398
    %v438 = vpop.f32.mrf.mxu0
    %v439 = vadd.f32 0.0, %v438
    %v440 = vpop.f32.mrf.mxu0
    %v441 = vpop.f32.mrf.mxu0
    %v442 = vpop.f32.mrf.mxu0
    %443 = vdwg.mxu0
    %v445 = vsel %vm374, %v396, 0
    %v448 = vsel %vm400, %v276, 0
    %450 = vmatprep.subr.bf16.mxu0 0
    %451 = vmatpush1.bf16.msra.mxu0 0
    %452 = vmatprep.subr.bf16.mxu0 0
    %453 = vmatpush1.bf16.msra.mxu0 0
    %454 = vmatprep.subr.bf16.mxu0 0
    %455 = vmatpush1.bf16.msra.mxu0 0
    %456 = vmatprep.subr.bf16.mxu0 0
    %457 = vmatpush1.bf16.msra.mxu0 0
    %458 = vmatprep.subr.bf16.mxu0 0
    %459 = vmatpush1.bf16.msra.mxu0 0
    %460 = vmatprep.subr.bf16.mxu0 0
    %461 = vmatpush1.bf16.msra.mxu0 0
    %462 = vmatprep.subr.bf16.mxu0 0
    %463 = vmatpush1.bf16.msra.mxu0 0
    %464 = vmatprep.subr.bf16.mxu0 0
    %465 = vmatpush1.bf16.msra.mxu0 %v448
    %466 = vmatprep.subr.bf16.mxu0 0
    %467 = vmatpush2.bf16.msra.mxu0 0
    %468 = vmatprep.subr.bf16.mxu0 0
    %469 = vmatpush2.bf16.msra.mxu0 0
    %470 = vmatprep.subr.bf16.mxu0 0
    %471 = vmatpush2.bf16.msra.mxu0 0
    %472 = vmatprep.subr.bf16.mxu0 0
    %473 = vmatpush2.bf16.msra.mxu0 0
    %474 = vmatprep.subr.bf16.mxu0 0
    %475 = vmatpush2.bf16.msra.mxu0 0
    %476 = vmatprep.subr.bf16.mxu0 0
    %477 = vmatpush2.bf16.msra.mxu0 0
    %478 = vmatprep.subr.bf16.mxu0 0
    %479 = vmatpush2.bf16.msra.mxu0 0
    %480 = vmatprep.subr.bf16.mxu0 0
    %481 = vmatpush2.bf16.msra.mxu0 0
    %482 = vmatprep.mubr.bf16.mxu0 0
    %483 = vmatmul.mubr.bf16.gmra.mxu0 %v445
    %v484 = vpop.f32.mrf.mxu0
    %v485 = vadd.f32 0.0, %v484
    %v486 = vpop.f32.mrf.mxu0
    %v487 = vpop.f32.mrf.mxu0
    %v488 = vpop.f32.mrf.mxu0
    %489 = vdwg.mxu0
    %v490 = vmul.f32 %v439, %v393
    %v491 = vmul.f32 %v485, %v394
    %v492 = vpack.c.bf16 %v491, %v490
    %v493 = vld [vmem:[%s2] sm:$0xf]
    %v494 = vld [vmem:[%s2 + $0x4] sm:$0xf]
    %v495 = vld [vmem:[%s2 + $0x8] sm:$0xf]
    %v496 = vld [vmem:[%s2 + $0xc] sm:$0xf]
    %498 = vrot.lane.b32.xlu0 %v271, 96
    %v499 = vpop.permute.xlu0 %498
    %501 = vrot.lane.b32.xlu0 %v273, 96
    %v502 = vpop.permute.xlu0 %501
    %v504 = vsel %vm277, %v499, 0
    %v507 = vsel %vm277, %v502, 0
    %509 = vmatprep.subr.bf16.mxu0 0
    %510 = vmatpush1.bf16.xpose.msra.mxu0 0
    %511 = vmatprep.subr.bf16.mxu0 0
    %512 = vmatpush1.bf16.xpose.msra.mxu0 0
    %513 = vmatprep.subr.bf16.mxu0 0
    %514 = vmatpush1.bf16.xpose.msra.mxu0 0
    %515 = vmatprep.subr.bf16.mxu0 0
    %516 = vmatpush1.bf16.xpose.msra.mxu0 0
    %517 = vmatprep.subr.bf16.mxu0 0
    %518 = vmatpush1.bf16.xpose.msra.mxu0 0
    %519 = vmatprep.subr.bf16.mxu0 0
    %520 = vmatpush1.bf16.xpose.msra.mxu0 0
    %521 = vmatprep.subr.bf16.mxu0 0
    %522 = vmatpush1.bf16.xpose.msra.mxu0 0
    %523 = vmatprep.subr.bf16.mxu0 0
    %524 = vmatpush1.bf16.xpose.msra.mxu0 %v507
    %525 = vmatprep.subr.bf16.mxu0 0
    %526 = vmatpush2.bf16.xpose.msra.mxu0 0
    %527 = vmatprep.subr.bf16.mxu0 0
    %528 = vmatpush2.bf16.xpose.msra.mxu0 0
    %529 = vmatprep.subr.bf16.mxu0 0
    %530 = vmatpush2.bf16.xpose.msra.mxu0 0
    %531 = vmatprep.subr.bf16.mxu0 0
    %532 = vmatpush2.bf16.xpose.msra.mxu0 0
    %533 = vmatprep.subr.bf16.mxu0 0
    %534 = vmatpush2.bf16.xpose.msra.mxu0 0
    %535 = vmatprep.subr.bf16.mxu0 0
    %536 = vmatpush2.bf16.xpose.msra.mxu0 0
    %537 = vmatprep.subr.bf16.mxu0 0
    %538 = vmatpush2.bf16.xpose.msra.mxu0 0
    %539 = vmatprep.subr.bf16.mxu0 0
    %540 = vmatpush2.bf16.xpose.msra.mxu0 0
    %541 = vmatprep.mubr.bf16.mxu0 0
    %542 = vmatmul.mubr.bf16.gmra.mxu0 %v504
    %v543 = vpop.f32.mrf.mxu0
    %v544 = vadd.f32 0.0, %v543
    %v545 = vpop.f32.mrf.mxu0
    %v546 = vpop.f32.mrf.mxu0
    %v547 = vpop.f32.mrf.mxu0
    %548 = vdwg.mxu0
    %550 = vrot.lane.b32.xlu0 %v272, 96
    %v551 = vpop.permute.xlu0 %550
    %553 = vrot.lane.b32.xlu0 %v274, 96
    %v554 = vpop.permute.xlu0 %553
    %v556 = vsel %vm277, %v551, 0
    %v559 = vsel %vm277, %v554, 0
    %561 = vmatprep.subr.bf16.mxu0 0
    %562 = vmatpush1.bf16.xpose.msra.mxu0 0
    %563 = vmatprep.subr.bf16.mxu0 0
    %564 = vmatpush1.bf16.xpose.msra.mxu0 0
    %565 = vmatprep.subr.bf16.mxu0 0
    %566 = vmatpush1.bf16.xpose.msra.mxu0 0
    %567 = vmatprep.subr.bf16.mxu0 0
    %568 = vmatpush1.bf16.xpose.msra.mxu0 0
    %569 = vmatprep.subr.bf16.mxu0 0
    %570 = vmatpush1.bf16.xpose.msra.mxu0 0
    %571 = vmatprep.subr.bf16.mxu0 0
    %572 = vmatpush1.bf16.xpose.msra.mxu0 0
    %573 = vmatprep.subr.bf16.mxu0 0
    %574 = vmatpush1.bf16.xpose.msra.mxu0 0
    %575 = vmatprep.subr.bf16.mxu0 0
    %576 = vmatpush1.bf16.xpose.msra.mxu0 %v559
    %577 = vmatprep.subr.bf16.mxu0 0
    %578 = vmatpush2.bf16.xpose.msra.mxu0 0
    %579 = vmatprep.subr.bf16.mxu0 0
    %580 = vmatpush2.bf16.xpose.msra.mxu0 0
    %581 = vmatprep.subr.bf16.mxu0 0
    %582 = vmatpush2.bf16.xpose.msra.mxu0 0
    %583 = vmatprep.subr.bf16.mxu0 0
    %584 = vmatpush2.bf16.xpose.msra.mxu0 0
    %585 = vmatprep.subr.bf16.mxu0 0
    %586 = vmatpush2.bf16.xpose.msra.mxu0 0
    %587 = vmatprep.subr.bf16.mxu0 0
    %588 = vmatpush2.bf16.xpose.msra.mxu0 0
    %589 = vmatprep.subr.bf16.mxu0 0
    %590 = vmatpush2.bf16.xpose.msra.mxu0 0
    %591 = vmatprep.subr.bf16.mxu0 0
    %592 = vmatpush2.bf16.xpose.msra.mxu0 0
    %593 = vmatprep.mubr.bf16.mxu0 0
    %594 = vmatmul.mubr.bf16.gmra.mxu0 %v556
    %v595 = vpop.f32.mrf.mxu0
    %v596 = vadd.f32 0.0, %v595
    %v597 = vpop.f32.mrf.mxu0
    %v598 = vpop.f32.mrf.mxu0
    %v599 = vpop.f32.mrf.mxu0
    %600 = vdwg.mxu0
    %v601 = vsel %vm371, %v544, -inf
    %v602 = vsel %vm371, %v596, -inf
    %v603 = vsel %vm374, %v601, -inf
    %604 = vmax.xlane.f32.xlu0 %v603
    %v605 = vpop.xlane.xlu0 %604
    %v606 = vsel %vm374, %v602, -inf
    %607 = vmax.xlane.f32.xlu0 %v606
    %v608 = vpop.xlane.xlu0 %607
    %v609 = vsub.f32 %v601, %v605
    %v610 = vsub.f32 %v602, %v608
    %v611 = vmul.f32 %v609, 1.442695
    %v612 = vpow.pop %v611
    %v613 = vmul.f32 %v610, 1.442695
    %v614 = vpow.pop %v613
    %v615 = vsel %vm374, %v612, 0.0
    %616 = vadd.xlane.f32.xlu0 %v615
    %v617 = vpop.xlane.xlu0 %616
    %v618 = vsel %vm374, %v614, 0.0
    %619 = vadd.xlane.f32.xlu0 %v618
    %v620 = vpop.xlane.xlu0 %619
    %v621 = vrcp.pop %v617
    %v622 = vrcp.pop %v620
    %v623 = vpack.c.bf16 %v612, %v612
    %v624 = vpack.c.bf16 %v614, %v614
    %626 = vrot.lane.b32.xlu0 %v275, 96
    %v627 = vpop.permute.xlu0 %626
    %v629 = vsel %vm374, %v623, 0
    %v632 = vsel %vm400, %v627, 0
    %634 = vmatprep.subr.bf16.mxu0 0
    %635 = vmatpush1.bf16.msra.mxu0 0
    %636 = vmatprep.subr.bf16.mxu0 0
    %637 = vmatpush1.bf16.msra.mxu0 0
    %638 = vmatprep.subr.bf16.mxu0 0
    %639 = vmatpush1.bf16.msra.mxu0 0
    %640 = vmatprep.subr.bf16.mxu0 0
    %641 = vmatpush1.bf16.msra.mxu0 0
    %642 = vmatprep.subr.bf16.mxu0 0
    %643 = vmatpush1.bf16.msra.mxu0 0
    %644 = vmatprep.subr.bf16.mxu0 0
    %645 = vmatpush1.bf16.msra.mxu0 0
    %646 = vmatprep.subr.bf16.mxu0 0
    %647 = vmatpush1.bf16.msra.mxu0 0
    %648 = vmatprep.subr.bf16.mxu0 0
    %649 = vmatpush1.bf16.msra.mxu0 %v632
    %650 = vmatprep.subr.bf16.mxu0 0
    %651 = vmatpush2.bf16.msra.mxu0 0
    %652 = vmatprep.subr.bf16.mxu0 0
    %653 = vmatpush2.bf16.msra.mxu0 0
    %654 = vmatprep.subr.bf16.mxu0 0
    %655 = vmatpush2.bf16.msra.mxu0 0
    %656 = vmatprep.subr.bf16.mxu0 0
    %657 = vmatpush2.bf16.msra.mxu0 0
    %658 = vmatprep.subr.bf16.mxu0 0
    %659 = vmatpush2.bf16.msra.mxu0 0
    %660 = vmatprep.subr.bf16.mxu0 0
    %661 = vmatpush2.bf16.msra.mxu0 0
    %662 = vmatprep.subr.bf16.mxu0 0
    %663 = vmatpush2.bf16.msra.mxu0 0
    %664 = vmatprep.subr.bf16.mxu0 0
    %665 = vmatpush2.bf16.msra.mxu0 0
    %666 = vmatprep.mubr.bf16.mxu0 0
    %667 = vmatmul.mubr.bf16.gmra.mxu0 %v629
    %v668 = vpop.f32.mrf.mxu0
    %v669 = vadd.f32 0.0, %v668
    %v670 = vpop.f32.mrf.mxu0
    %v671 = vpop.f32.mrf.mxu0
    %v672 = vpop.f32.mrf.mxu0
    %673 = vdwg.mxu0
    %675 = vrot.lane.b32.xlu0 %v276, 96
    %v676 = vpop.permute.xlu0 %675
    %v678 = vsel %vm374, %v624, 0
    %v681 = vsel %vm400, %v676, 0
    %683 = vmatprep.subr.bf16.mxu0 0
    %684 = vmatpush1.bf16.msra.mxu0 0
    %685 = vmatprep.subr.bf16.mxu0 0
    %686 = vmatpush1.bf16.msra.mxu0 0
    %687 = vmatprep.subr.bf16.mxu0 0
    %688 = vmatpush1.bf16.msra.mxu0 0
    %689 = vmatprep.subr.bf16.mxu0 0
    %690 = vmatpush1.bf16.msra.mxu0 0
    %691 = vmatprep.subr.bf16.mxu0 0
    %692 = vmatpush1.bf16.msra.mxu0 0
    %693 = vmatprep.subr.bf16.mxu0 0
    %694 = vmatpush1.bf16.msra.mxu0 0
    %695 = vmatprep.subr.bf16.mxu0 0
    %696 = vmatpush1.bf16.msra.mxu0 0
    %697 = vmatprep.subr.bf16.mxu0 0
    %698 = vmatpush1.bf16.msra.mxu0 %v681
    %699 = vmatprep.subr.bf16.mxu0 0
    %700 = vmatpush2.bf16.msra.mxu0 0
    %701 = vmatprep.subr.bf16.mxu0 0
    %702 = vmatpush2.bf16.msra.mxu0 0
    %703 = vmatprep.subr.bf16.mxu0 0
    %704 = vmatpush2.bf16.msra.mxu0 0
    %705 = vmatprep.subr.bf16.mxu0 0
    %706 = vmatpush2.bf16.msra.mxu0 0
    %707 = vmatprep.subr.bf16.mxu0 0
    %708 = vmatpush2.bf16.msra.mxu0 0
    %709 = vmatprep.subr.bf16.mxu0 0
    %710 = vmatpush2.bf16.msra.mxu0 0
    %711 = vmatprep.subr.bf16.mxu0 0
    %712 = vmatpush2.bf16.msra.mxu0 0
    %713 = vmatprep.subr.bf16.mxu0 0
    %714 = vmatpush2.bf16.msra.mxu0 0
    %715 = vmatprep.mubr.bf16.mxu0 0
    %716 = vmatmul.mubr.bf16.gmra.mxu0 %v678
    %v717 = vpop.f32.mrf.mxu0
    %v718 = vadd.f32 0.0, %v717
    %v719 = vpop.f32.mrf.mxu0
    %v720 = vpop.f32.mrf.mxu0
    %v721 = vpop.f32.mrf.mxu0
    %722 = vdwg.mxu0
    %v723 = vmul.f32 %v669, %v621
    %v724 = vmul.f32 %v718, %v622
    %v725 = vpack.c.bf16 %v724, %v723
    %v726 = vld [vmem:[%s2 + $0x10] sm:$0xf]
    %v727 = vld [vmem:[%s2 + $0x14] sm:$0xf]
    %v728 = vld [vmem:[%s2 + $0x18] sm:$0xf]
    %v729 = vld [vmem:[%s2 + $0x1c] sm:$0xf]
    %v734 = vunpack.c.l.b16 %v726
    %v735 = vunpack.c.l.b16 %v727
    %v736 = vunpack.c.l.b16 %v728
    %v737 = vunpack.c.l.b16 %v729
    %v738 = vpack.c.b16 %v735, %v734
    %v739 = vpack.c.b16 %v737, %v736
    %v743 = vsel %vm277, %v725, 0
    %745 = vmatprep.subr.bf16.mxu0 0
    %746 = vmatpush1.bf16.msra.mxu0 0
    %747 = vmatprep.subr.bf16.mxu0 0
    %748 = vmatpush1.bf16.msra.mxu0 0
    %749 = vmatprep.subr.bf16.mxu0 0
    %750 = vmatpush1.bf16.msra.mxu0 0
    %751 = vmatprep.subr.bf16.mxu0 0
    %752 = vmatpush1.bf16.msra.mxu0 0
    %753 = vmatprep.subr.bf16.mxu0 0
    %754 = vmatpush1.bf16.msra.mxu0 0
    %755 = vmatprep.subr.bf16.mxu0 0
    %756 = vmatpush1.bf16.msra.mxu0 0
    %757 = vmatprep.subr.bf16.mxu0 0
    %758 = vmatpush1.bf16.msra.mxu0 %v739
    %759 = vmatprep.subr.bf16.mxu0 0
    %760 = vmatpush1.bf16.msra.mxu0 %v738
    %761 = vmatprep.subr.bf16.mxu0 0
    %762 = vmatpush2.bf16.msra.mxu0 0
    %763 = vmatprep.subr.bf16.mxu0 0
    %764 = vmatpush2.bf16.msra.mxu0 0
    %765 = vmatprep.subr.bf16.mxu0 0
    %766 = vmatpush2.bf16.msra.mxu0 0
    %767 = vmatprep.subr.bf16.mxu0 0
    %768 = vmatpush2.bf16.msra.mxu0 0
    %769 = vmatprep.subr.bf16.mxu0 0
    %770 = vmatpush2.bf16.msra.mxu0 0
    %771 = vmatprep.subr.bf16.mxu0 0
    %772 = vmatpush2.bf16.msra.mxu0 0
    %773 = vmatprep.subr.bf16.mxu0 0
    %774 = vmatpush2.bf16.msra.mxu0 0
    %775 = vmatprep.subr.bf16.mxu0 0
    %776 = vmatpush2.bf16.msra.mxu0 0
    %777 = vmatprep.mubr.bf16.mxu0 0
    %778 = vmatmul.mubr.bf16.gmra.mxu0 %v743
    %v779 = vpop.f32.mrf.mxu0
    %v780 = vadd.f32 0.0, %v779
    %v781 = vpop.f32.mrf.mxu0
    %v782 = vpop.f32.mrf.mxu0
    %v783 = vadd.f32 0.0, %v782
    %v784 = vpop.f32.mrf.mxu0
    %785 = vdwg.mxu0
    %v790 = vunpack.c.l.b16 %v493
    %v791 = vunpack.c.l.b16 %v494
    %v792 = vunpack.c.l.b16 %v495
    %v793 = vunpack.c.l.b16 %v496
    %v794 = vpack.c.b16 %v791, %v790
    %v795 = vpack.c.b16 %v793, %v792
    %v799 = vsel %vm277, %v492, 0
    %801 = vmatprep.subr.bf16.mxu0 0
    %802 = vmatpush1.bf16.msra.mxu0 0
    %803 = vmatprep.subr.bf16.mxu0 0
    %804 = vmatpush1.bf16.msra.mxu0 0
    %805 = vmatprep.subr.bf16.mxu0 0
    %806 = vmatpush1.bf16.msra.mxu0 0
    %807 = vmatprep.subr.bf16.mxu0 0
    %808 = vmatpush1.bf16.msra.mxu0 0
    %809 = vmatprep.subr.bf16.mxu0 0
    %810 = vmatpush1.bf16.msra.mxu0 0
    %811 = vmatprep.subr.bf16.mxu0 0
    %812 = vmatpush1.bf16.msra.mxu0 0
    %813 = vmatprep.subr.bf16.mxu0 0
    %814 = vmatpush1.bf16.msra.mxu0 %v795
    %815 = vmatprep.subr.bf16.mxu0 0
    %816 = vmatpush1.bf16.msra.mxu0 %v794
    %817 = vmatprep.subr.bf16.mxu0 0
    %818 = vmatpush2.bf16.msra.mxu0 0
    %819 = vmatprep.subr.bf16.mxu0 0
    %820 = vmatpush2.bf16.msra.mxu0 0
    %821 = vmatprep.subr.bf16.mxu0 0
    %822 = vmatpush2.bf16.msra.mxu0 0
    %823 = vmatprep.subr.bf16.mxu0 0
    %824 = vmatpush2.bf16.msra.mxu0 0
    %825 = vmatprep.subr.bf16.mxu0 0
    %826 = vmatpush2.bf16.msra.mxu0 0
    %827 = vmatprep.subr.bf16.mxu0 0
    %828 = vmatpush2.bf16.msra.mxu0 0
    %829 = vmatprep.subr.bf16.mxu0 0
    %830 = vmatpush2.bf16.msra.mxu0 0
    %831 = vmatprep.subr.bf16.mxu0 0
    %832 = vmatpush2.bf16.msra.mxu0 0
    %833 = vmatprep.mubr.bf16.mxu0 0
    %834 = vmatmul.mubr.bf16.gmra.mxu0 %v799
    %v835 = vpop.f32.mrf.mxu0
    %v836 = vadd.f32 %v780, %v835
    %v837 = vpop.f32.mrf.mxu0
    %v838 = vpop.f32.mrf.mxu0
    %v839 = vadd.f32 %v783, %v838
    %v840 = vpop.f32.mrf.mxu0
    %841 = vdwg.mxu0
    %842 = vrot.lane.b32.xlu0 %v271, 64
    %v843 = vpop.permute.xlu0 %842
    %844 = vrot.lane.b32.xlu0 %v273, 64
    %v845 = vpop.permute.xlu0 %844
    %v847 = vsel %vm277, %v843, 0
    %v850 = vsel %vm277, %v845, 0
    %852 = vmatprep.subr.bf16.mxu0 0
    %853 = vmatpush1.bf16.xpose.msra.mxu0 0
    %854 = vmatprep.subr.bf16.mxu0 0
    %855 = vmatpush1.bf16.xpose.msra.mxu0 0
    %856 = vmatprep.subr.bf16.mxu0 0
    %857 = vmatpush1.bf16.xpose.msra.mxu0 0
    %858 = vmatprep.subr.bf16.mxu0 0
    %859 = vmatpush1.bf16.xpose.msra.mxu0 0
    %860 = vmatprep.subr.bf16.mxu0 0
    %861 = vmatpush1.bf16.xpose.msra.mxu0 0
    %862 = vmatprep.subr.bf16.mxu0 0
    %863 = vmatpush1.bf16.xpose.msra.mxu0 0
    %864 = vmatprep.subr.bf16.mxu0 0
    %865 = vmatpush1.bf16.xpose.msra.mxu0 0
    %866 = vmatprep.subr.bf16.mxu0 0
    %867 = vmatpush1.bf16.xpose.msra.mxu0 %v850
    %868 = vmatprep.subr.bf16.mxu0 0
    %869 = vmatpush2.bf16.xpose.msra.mxu0 0
    %870 = vmatprep.subr.bf16.mxu0 0
    %871 = vmatpush2.bf16.xpose.msra.mxu0 0
    %872 = vmatprep.subr.bf16.mxu0 0
    %873 = vmatpush2.bf16.xpose.msra.mxu0 0
    %874 = vmatprep.subr.bf16.mxu0 0
    %875 = vmatpush2.bf16.xpose.msra.mxu0 0
    %876 = vmatprep.subr.bf16.mxu0 0
    %877 = vmatpush2.bf16.xpose.msra.mxu0 0
    %878 = vmatprep.subr.bf16.mxu0 0
    %879 = vmatpush2.bf16.xpose.msra.mxu0 0
    %880 = vmatprep.subr.bf16.mxu0 0
    %881 = vmatpush2.bf16.xpose.msra.mxu0 0
    %882 = vmatprep.subr.bf16.mxu0 0
    %883 = vmatpush2.bf16.xpose.msra.mxu0 0
    %884 = vmatprep.mubr.bf16.mxu0 0
    %885 = vmatmul.mubr.bf16.gmra.mxu0 %v847
    %v886 = vpop.f32.mrf.mxu0
    %v887 = vadd.f32 0.0, %v886
    %v888 = vpop.f32.mrf.mxu0
    %v889 = vpop.f32.mrf.mxu0
    %v890 = vpop.f32.mrf.mxu0
    %891 = vdwg.mxu0
    %892 = vrot.lane.b32.xlu0 %v272, 64
    %v893 = vpop.permute.xlu0 %892
    %894 = vrot.lane.b32.xlu0 %v274, 64
    %v895 = vpop.permute.xlu0 %894
    %v897 = vsel %vm277, %v893, 0
    %v900 = vsel %vm277, %v895, 0
    %902 = vmatprep.subr.bf16.mxu0 0
    %903 = vmatpush1.bf16.xpose.msra.mxu0 0
    %904 = vmatprep.subr.bf16.mxu0 0
    %905 = vmatpush1.bf16.xpose.msra.mxu0 0
    %906 = vmatprep.subr.bf16.mxu0 0
    %907 = vmatpush1.bf16.xpose.msra.mxu0 0
    %908 = vmatprep.subr.bf16.mxu0 0
    %909 = vmatpush1.bf16.xpose.msra.mxu0 0
    %910 = vmatprep.subr.bf16.mxu0 0
    %911 = vmatpush1.bf16.xpose.msra.mxu0 0
    %912 = vmatprep.subr.bf16.mxu0 0
    %913 = vmatpush1.bf16.xpose.msra.mxu0 0
    %914 = vmatprep.subr.bf16.mxu0 0
    %915 = vmatpush1.bf16.xpose.msra.mxu0 0
    %916 = vmatprep.subr.bf16.mxu0 0
    %917 = vmatpush1.bf16.xpose.msra.mxu0 %v900
    %918 = vmatprep.subr.bf16.mxu0 0
    %919 = vmatpush2.bf16.xpose.msra.mxu0 0
    %920 = vmatprep.subr.bf16.mxu0 0
    %921 = vmatpush2.bf16.xpose.msra.mxu0 0
    %922 = vmatprep.subr.bf16.mxu0 0
    %923 = vmatpush2.bf16.xpose.msra.mxu0 0
    %924 = vmatprep.subr.bf16.mxu0 0
    %925 = vmatpush2.bf16.xpose.msra.mxu0 0
    %926 = vmatprep.subr.bf16.mxu0 0
    %927 = vmatpush2.bf16.xpose.msra.mxu0 0
    %928 = vmatprep.subr.bf16.mxu0 0
    %929 = vmatpush2.bf16.xpose.msra.mxu0 0
    %930 = vmatprep.subr.bf16.mxu0 0
    %931 = vmatpush2.bf16.xpose.msra.mxu0 0
    %932 = vmatprep.subr.bf16.mxu0 0
    %933 = vmatpush2.bf16.xpose.msra.mxu0 0
    %934 = vmatprep.mubr.bf16.mxu0 0
    %935 = vmatmul.mubr.bf16.gmra.mxu0 %v897
    %v936 = vpop.f32.mrf.mxu0
    %v937 = vadd.f32 0.0, %v936
    %v938 = vpop.f32.mrf.mxu0
    %v939 = vpop.f32.mrf.mxu0
    %v940 = vpop.f32.mrf.mxu0
    %941 = vdwg.mxu0
    %v942 = vsel %vm371, %v887, -inf
    %v943 = vsel %vm371, %v937, -inf
    %v944 = vsel %vm374, %v942, -inf
    %945 = vmax.xlane.f32.xlu0 %v944
    %v946 = vpop.xlane.xlu0 %945
    %v947 = vsel %vm374, %v943, -inf
    %948 = vmax.xlane.f32.xlu0 %v947
    %v949 = vpop.xlane.xlu0 %948
    %v950 = vsub.f32 %v942, %v946
    %v951 = vsub.f32 %v943, %v949
    %v952 = vmul.f32 %v950, 1.442695
    %v953 = vpow.pop %v952
    %v954 = vmul.f32 %v951, 1.442695
    %v955 = vpow.pop %v954
    %v956 = vsel %vm374, %v953, 0.0
    %957 = vadd.xlane.f32.xlu0 %v956
    %v958 = vpop.xlane.xlu0 %957
    %v959 = vsel %vm374, %v955, 0.0
    %960 = vadd.xlane.f32.xlu0 %v959
    %v961 = vpop.xlane.xlu0 %960
    %v962 = vrcp.pop %v958
    %v963 = vrcp.pop %v961
    %v964 = vpack.c.bf16 %v953, %v953
    %v965 = vpack.c.bf16 %v955, %v955
    %966 = vrot.lane.b32.xlu0 %v275, 64
    %v967 = vpop.permute.xlu0 %966
    %v969 = vsel %vm374, %v964, 0
    %v972 = vsel %vm400, %v967, 0
    %974 = vmatprep.subr.bf16.mxu0 0
    %975 = vmatpush1.bf16.msra.mxu0 0
    %976 = vmatprep.subr.bf16.mxu0 0
    %977 = vmatpush1.bf16.msra.mxu0 0
    %978 = vmatprep.subr.bf16.mxu0 0
    %979 = vmatpush1.bf16.msra.mxu0 0
    %980 = vmatprep.subr.bf16.mxu0 0
    %981 = vmatpush1.bf16.msra.mxu0 0
    %982 = vmatprep.subr.bf16.mxu0 0
    %983 = vmatpush1.bf16.msra.mxu0 0
    %984 = vmatprep.subr.bf16.mxu0 0
    %985 = vmatpush1.bf16.msra.mxu0 0
    %986 = vmatprep.subr.bf16.mxu0 0
    %987 = vmatpush1.bf16.msra.mxu0 0
    %988 = vmatprep.subr.bf16.mxu0 0
    %989 = vmatpush1.bf16.msra.mxu0 %v972
    %990 = vmatprep.subr.bf16.mxu0 0
    %991 = vmatpush2.bf16.msra.mxu0 0
    %992 = vmatprep.subr.bf16.mxu0 0
    %993 = vmatpush2.bf16.msra.mxu0 0
    %994 = vmatprep.subr.bf16.mxu0 0
    %995 = vmatpush2.bf16.msra.mxu0 0
    %996 = vmatprep.subr.bf16.mxu0 0
    %997 = vmatpush2.bf16.msra.mxu0 0
    %998 = vmatprep.subr.bf16.mxu0 0
    %999 = vmatpush2.bf16.msra.mxu0 0
    %1000 = vmatprep.subr.bf16.mxu0 0
    %1001 = vmatpush2.bf16.msra.mxu0 0
    %1002 = vmatprep.subr.bf16.mxu0 0
    %1003 = vmatpush2.bf16.msra.mxu0 0
    %1004 = vmatprep.subr.bf16.mxu0 0
    %1005 = vmatpush2.bf16.msra.mxu0 0
    %1006 = vmatprep.mubr.bf16.mxu0 0
    %1007 = vmatmul.mubr.bf16.gmra.mxu0 %v969
    %v1008 = vpop.f32.mrf.mxu0
    %v1009 = vadd.f32 0.0, %v1008
    %v1010 = vpop.f32.mrf.mxu0
    %v1011 = vpop.f32.mrf.mxu0
    %v1012 = vpop.f32.mrf.mxu0
    %1013 = vdwg.mxu0
    %1014 = vrot.lane.b32.xlu0 %v276, 64
    %v1015 = vpop.permute.xlu0 %1014
    %v1017 = vsel %vm374, %v965, 0
    %v1020 = vsel %vm400, %v1015, 0
    %1022 = vmatprep.subr.bf16.mxu0 0
    %1023 = vmatpush1.bf16.msra.mxu0 0
    %1024 = vmatprep.subr.bf16.mxu0 0
    %1025 = vmatpush1.bf16.msra.mxu0 0
    %1026 = vmatprep.subr.bf16.mxu0 0
    %1027 = vmatpush1.bf16.msra.mxu0 0
    %1028 = vmatprep.subr.bf16.mxu0 0
    %1029 = vmatpush1.bf16.msra.mxu0 0
    %1030 = vmatprep.subr.bf16.mxu0 0
    %1031 = vmatpush1.bf16.msra.mxu0 0
    %1032 = vmatprep.subr.bf16.mxu0 0
    %1033 = vmatpush1.bf16.msra.mxu0 0
    %1034 = vmatprep.subr.bf16.mxu0 0
    %1035 = vmatpush1.bf16.msra.mxu0 0
    %1036 = vmatprep.subr.bf16.mxu0 0
    %1037 = vmatpush1.bf16.msra.mxu0 %v1020
    %1038 = vmatprep.subr.bf16.mxu0 0
    %1039 = vmatpush2.bf16.msra.mxu0 0
    %1040 = vmatprep.subr.bf16.mxu0 0
    %1041 = vmatpush2.bf16.msra.mxu0 0
    %1042 = vmatprep.subr.bf16.mxu0 0
    %1043 = vmatpush2.bf16.msra.mxu0 0
    %1044 = vmatprep.subr.bf16.mxu0 0
    %1045 = vmatpush2.bf16.msra.mxu0 0
    %1046 = vmatprep.subr.bf16.mxu0 0
    %1047 = vmatpush2.bf16.msra.mxu0 0
    %1048 = vmatprep.subr.bf16.mxu0 0
    %1049 = vmatpush2.bf16.msra.mxu0 0
    %1050 = vmatprep.subr.bf16.mxu0 0
    %1051 = vmatpush2.bf16.msra.mxu0 0
    %1052 = vmatprep.subr.bf16.mxu0 0
    %1053 = vmatpush2.bf16.msra.mxu0 0
    %1054 = vmatprep.mubr.bf16.mxu0 0
    %1055 = vmatmul.mubr.bf16.gmra.mxu0 %v1017
    %v1056 = vpop.f32.mrf.mxu0
    %v1057 = vadd.f32 0.0, %v1056
    %v1058 = vpop.f32.mrf.mxu0
    %v1059 = vpop.f32.mrf.mxu0
    %v1060 = vpop.f32.mrf.mxu0
    %1061 = vdwg.mxu0
    %v1062 = vmul.f32 %v1009, %v962
    %v1063 = vmul.f32 %v1057, %v963
    %v1064 = vpack.c.bf16 %v1063, %v1062
    %v1065 = vld [vmem:[%s2 + $0x20] sm:$0xf]
    %v1066 = vld [vmem:[%s2 + $0x24] sm:$0xf]
    %v1067 = vld [vmem:[%s2 + $0x28] sm:$0xf]
    %v1068 = vld [vmem:[%s2 + $0x2c] sm:$0xf]
    %v1073 = vunpack.c.l.b16 %v1065
    %v1074 = vunpack.c.l.b16 %v1066
    %v1075 = vunpack.c.l.b16 %v1067
    %v1076 = vunpack.c.l.b16 %v1068
    %v1077 = vpack.c.b16 %v1074, %v1073
    %v1078 = vpack.c.b16 %v1076, %v1075
    %v1082 = vsel %vm277, %v1064, 0
    %1084 = vmatprep.subr.bf16.mxu0 0
    %1085 = vmatpush1.bf16.msra.mxu0 0
    %1086 = vmatprep.subr.bf16.mxu0 0
    %1087 = vmatpush1.bf16.msra.mxu0 0
    %1088 = vmatprep.subr.bf16.mxu0 0
    %1089 = vmatpush1.bf16.msra.mxu0 0
    %1090 = vmatprep.subr.bf16.mxu0 0
    %1091 = vmatpush1.bf16.msra.mxu0 0
    %1092 = vmatprep.subr.bf16.mxu0 0
    %1093 = vmatpush1.bf16.msra.mxu0 0
    %1094 = vmatprep.subr.bf16.mxu0 0
    %1095 = vmatpush1.bf16.msra.mxu0 0
    %1096 = vmatprep.subr.bf16.mxu0 0
    %1097 = vmatpush1.bf16.msra.mxu0 %v1078
    %1098 = vmatprep.subr.bf16.mxu0 0
    %1099 = vmatpush1.bf16.msra.mxu0 %v1077
    %1100 = vmatprep.subr.bf16.mxu0 0
    %1101 = vmatpush2.bf16.msra.mxu0 0
    %1102 = vmatprep.subr.bf16.mxu0 0
    %1103 = vmatpush2.bf16.msra.mxu0 0
    %1104 = vmatprep.subr.bf16.mxu0 0
    %1105 = vmatpush2.bf16.msra.mxu0 0
    %1106 = vmatprep.subr.bf16.mxu0 0
    %1107 = vmatpush2.bf16.msra.mxu0 0
    %1108 = vmatprep.subr.bf16.mxu0 0
    %1109 = vmatpush2.bf16.msra.mxu0 0
    %1110 = vmatprep.subr.bf16.mxu0 0
    %1111 = vmatpush2.bf16.msra.mxu0 0
    %1112 = vmatprep.subr.bf16.mxu0 0
    %1113 = vmatpush2.bf16.msra.mxu0 0
    %1114 = vmatprep.subr.bf16.mxu0 0
    %1115 = vmatpush2.bf16.msra.mxu0 0
    %1116 = vmatprep.mubr.bf16.mxu0 0
    %1117 = vmatmul.mubr.bf16.gmra.mxu0 %v1082
    %v1118 = vpop.f32.mrf.mxu0
    %v1119 = vadd.f32 0.0, %v1118
    %v1120 = vpop.f32.mrf.mxu0
    %v1121 = vpop.f32.mrf.mxu0
    %v1122 = vadd.f32 0.0, %v1121
    %v1123 = vpop.f32.mrf.mxu0
    %1124 = vdwg.mxu0
    %v1125 = vadd.f32 %v836, %v1119
    %v1126 = vadd.f32 %v839, %v1122
    %1127 = vrot.lane.b32.xlu0 %v271, 32
    %v1128 = vpop.permute.xlu0 %1127
    %1129 = vrot.lane.b32.xlu0 %v273, 32
    %v1130 = vpop.permute.xlu0 %1129
    %v1132 = vsel %vm277, %v1128, 0
    %v1135 = vsel %vm277, %v1130, 0
    %1137 = vmatprep.subr.bf16.mxu0 0
    %1138 = vmatpush1.bf16.xpose.msra.mxu0 0
    %1139 = vmatprep.subr.bf16.mxu0 0
    %1140 = vmatpush1.bf16.xpose.msra.mxu0 0
    %1141 = vmatprep.subr.bf16.mxu0 0
    %1142 = vmatpush1.bf16.xpose.msra.mxu0 0
    %1143 = vmatprep.subr.bf16.mxu0 0
    %1144 = vmatpush1.bf16.xpose.msra.mxu0 0
    %1145 = vmatprep.subr.bf16.mxu0 0
    %1146 = vmatpush1.bf16.xpose.msra.mxu0 0
    %1147 = vmatprep.subr.bf16.mxu0 0
    %1148 = vmatpush1.bf16.xpose.msra.mxu0 0
    %1149 = vmatprep.subr.bf16.mxu0 0
    %1150 = vmatpush1.bf16.xpose.msra.mxu0 0
    %1151 = vmatprep.subr.bf16.mxu0 0
    %1152 = vmatpush1.bf16.xpose.msra.mxu0 %v1135
    %1153 = vmatprep.subr.bf16.mxu0 0
    %1154 = vmatpush2.bf16.xpose.msra.mxu0 0
    %1155 = vmatprep.subr.bf16.mxu0 0
    %1156 = vmatpush2.bf16.xpose.msra.mxu0 0
    %1157 = vmatprep.subr.bf16.mxu0 0
    %1158 = vmatpush2.bf16.xpose.msra.mxu0 0
    %1159 = vmatprep.subr.bf16.mxu0 0
    %1160 = vmatpush2.bf16.xpose.msra.mxu0 0
    %1161 = vmatprep.subr.bf16.mxu0 0
    %1162 = vmatpush2.bf16.xpose.msra.mxu0 0
    %1163 = vmatprep.subr.bf16.mxu0 0
    %1164 = vmatpush2.bf16.xpose.msra.mxu0 0
    %1165 = vmatprep.subr.bf16.mxu0 0
    %1166 = vmatpush2.bf16.xpose.msra.mxu0 0
    %1167 = vmatprep.subr.bf16.mxu0 0
    %1168 = vmatpush2.bf16.xpose.msra.mxu0 0
    %1169 = vmatprep.mubr.bf16.mxu0 0
    %1170 = vmatmul.mubr.bf16.gmra.mxu0 %v1132
    %v1171 = vpop.f32.mrf.mxu0
    %v1172 = vadd.f32 0.0, %v1171
    %v1173 = vpop.f32.mrf.mxu0
    %v1174 = vpop.f32.mrf.mxu0
    %v1175 = vpop.f32.mrf.mxu0
    %1176 = vdwg.mxu0
    %1177 = vrot.lane.b32.xlu0 %v272, 32
    %v1178 = vpop.permute.xlu0 %1177
    %1179 = vrot.lane.b32.xlu0 %v274, 32
    %v1180 = vpop.permute.xlu0 %1179
    %v1182 = vsel %vm277, %v1178, 0
    %v1185 = vsel %vm277, %v1180, 0
    %1187 = vmatprep.subr.bf16.mxu0 0
    %1188 = vmatpush1.bf16.xpose.msra.mxu0 0
    %1189 = vmatprep.subr.bf16.mxu0 0
    %1190 = vmatpush1.bf16.xpose.msra.mxu0 0
    %1191 = vmatprep.subr.bf16.mxu0 0
    %1192 = vmatpush1.bf16.xpose.msra.mxu0 0
    %1193 = vmatprep.subr.bf16.mxu0 0
    %1194 = vmatpush1.bf16.xpose.msra.mxu0 0
    %1195 = vmatprep.subr.bf16.mxu0 0
    %1196 = vmatpush1.bf16.xpose.msra.mxu0 0
    %1197 = vmatprep.subr.bf16.mxu0 0
    %1198 = vmatpush1.bf16.xpose.msra.mxu0 0
    %1199 = vmatprep.subr.bf16.mxu0 0
    %1200 = vmatpush1.bf16.xpose.msra.mxu0 0
    %1201 = vmatprep.subr.bf16.mxu0 0
    %1202 = vmatpush1.bf16.xpose.msra.mxu0 %v1185
    %1203 = vmatprep.subr.bf16.mxu0 0
    %1204 = vmatpush2.bf16.xpose.msra.mxu0 0
    %1205 = vmatprep.subr.bf16.mxu0 0
    %1206 = vmatpush2.bf16.xpose.msra.mxu0 0
    %1207 = vmatprep.subr.bf16.mxu0 0
    %1208 = vmatpush2.bf16.xpose.msra.mxu0 0
    %1209 = vmatprep.subr.bf16.mxu0 0
    %1210 = vmatpush2.bf16.xpose.msra.mxu0 0
    %1211 = vmatprep.subr.bf16.mxu0 0
    %1212 = vmatpush2.bf16.xpose.msra.mxu0 0
    %1213 = vmatprep.subr.bf16.mxu0 0
    %1214 = vmatpush2.bf16.xpose.msra.mxu0 0
    %1215 = vmatprep.subr.bf16.mxu0 0
    %1216 = vmatpush2.bf16.xpose.msra.mxu0 0
    %1217 = vmatprep.subr.bf16.mxu0 0
    %1218 = vmatpush2.bf16.xpose.msra.mxu0 0
    %1219 = vmatprep.mubr.bf16.mxu0 0
    %1220 = vmatmul.mubr.bf16.gmra.mxu0 %v1182
    %v1221 = vpop.f32.mrf.mxu0
    %v1222 = vadd.f32 0.0, %v1221
    %v1223 = vpop.f32.mrf.mxu0
    %v1224 = vpop.f32.mrf.mxu0
    %v1225 = vpop.f32.mrf.mxu0
    %1226 = vdwg.mxu0
    %v1227 = vsel %vm371, %v1172, -inf
    %v1228 = vsel %vm371, %v1222, -inf
    %v1229 = vsel %vm374, %v1227, -inf
    %1230 = vmax.xlane.f32.xlu0 %v1229
    %v1231 = vpop.xlane.xlu0 %1230
    %v1232 = vsel %vm374, %v1228, -inf
    %1233 = vmax.xlane.f32.xlu0 %v1232
    %v1234 = vpop.xlane.xlu0 %1233
    %v1235 = vsub.f32 %v1227, %v1231
    %v1236 = vsub.f32 %v1228, %v1234
    %v1237 = vmul.f32 %v1235, 1.442695
    %v1238 = vpow.pop %v1237
    %v1239 = vmul.f32 %v1236, 1.442695
    %v1240 = vpow.pop %v1239
    %v1241 = vsel %vm374, %v1238, 0.0
    %1242 = vadd.xlane.f32.xlu0 %v1241
    %v1243 = vpop.xlane.xlu0 %1242
    %v1244 = vsel %vm374, %v1240, 0.0
    %1245 = vadd.xlane.f32.xlu0 %v1244
    %v1246 = vpop.xlane.xlu0 %1245
    %v1247 = vrcp.pop %v1243
    %v1248 = vrcp.pop %v1246
    %v1249 = vpack.c.bf16 %v1238, %v1238
    %v1250 = vpack.c.bf16 %v1240, %v1240
    %1251 = vrot.lane.b32.xlu0 %v275, 32
    %v1252 = vpop.permute.xlu0 %1251
    %v1254 = vsel %vm374, %v1249, 0
    %v1257 = vsel %vm400, %v1252, 0
    %1259 = vmatprep.subr.bf16.mxu0 0
    %1260 = vmatpush1.bf16.msra.mxu0 0
    %1261 = vmatprep.subr.bf16.mxu0 0
    %1262 = vmatpush1.bf16.msra.mxu0 0
    %1263 = vmatprep.subr.bf16.mxu0 0
    %1264 = vmatpush1.bf16.msra.mxu0 0
    %1265 = vmatprep.subr.bf16.mxu0 0
    %1266 = vmatpush1.bf16.msra.mxu0 0
    %1267 = vmatprep.subr.bf16.mxu0 0
    %1268 = vmatpush1.bf16.msra.mxu0 0
    %1269 = vmatprep.subr.bf16.mxu0 0
    %1270 = vmatpush1.bf16.msra.mxu0 0
    %1271 = vmatprep.subr.bf16.mxu0 0
    %1272 = vmatpush1.bf16.msra.mxu0 0
    %1273 = vmatprep.subr.bf16.mxu0 0
    %1274 = vmatpush1.bf16.msra.mxu0 %v1257
    %1275 = vmatprep.subr.bf16.mxu0 0
    %1276 = vmatpush2.bf16.msra.mxu0 0
    %1277 = vmatprep.subr.bf16.mxu0 0
    %1278 = vmatpush2.bf16.msra.mxu0 0
    %1279 = vmatprep.subr.bf16.mxu0 0
    %1280 = vmatpush2.bf16.msra.mxu0 0
    %1281 = vmatprep.subr.bf16.mxu0 0
    %1282 = vmatpush2.bf16.msra.mxu0 0
    %1283 = vmatprep.subr.bf16.mxu0 0
    %1284 = vmatpush2.bf16.msra.mxu0 0
    %1285 = vmatprep.subr.bf16.mxu0 0
    %1286 = vmatpush2.bf16.msra.mxu0 0
    %1287 = vmatprep.subr.bf16.mxu0 0
    %1288 = vmatpush2.bf16.msra.mxu0 0
    %1289 = vmatprep.subr.bf16.mxu0 0
    %1290 = vmatpush2.bf16.msra.mxu0 0
    %1291 = vmatprep.mubr.bf16.mxu0 0
    %1292 = vmatmul.mubr.bf16.gmra.mxu0 %v1254
    %v1293 = vpop.f32.mrf.mxu0
    %v1294 = vadd.f32 0.0, %v1293
    %v1295 = vpop.f32.mrf.mxu0
    %v1296 = vpop.f32.mrf.mxu0
    %v1297 = vpop.f32.mrf.mxu0
    %1298 = vdwg.mxu0
    %1299 = vrot.lane.b32.xlu0 %v276, 32
    %v1300 = vpop.permute.xlu0 %1299
    %v1302 = vsel %vm374, %v1250, 0
    %v1305 = vsel %vm400, %v1300, 0
    %1307 = vmatprep.subr.bf16.mxu0 0
    %1308 = vmatpush1.bf16.msra.mxu0 0
    %1309 = vmatprep.subr.bf16.mxu0 0
    %1310 = vmatpush1.bf16.msra.mxu0 0
    %1311 = vmatprep.subr.bf16.mxu0 0
    %1312 = vmatpush1.bf16.msra.mxu0 0
    %1313 = vmatprep.subr.bf16.mxu0 0
    %1314 = vmatpush1.bf16.msra.mxu0 0
    %1315 = vmatprep.subr.bf16.mxu0 0
    %1316 = vmatpush1.bf16.msra.mxu0 0
    %1317 = vmatprep.subr.bf16.mxu0 0
    %1318 = vmatpush1.bf16.msra.mxu0 0
    %1319 = vmatprep.subr.bf16.mxu0 0
    %1320 = vmatpush1.bf16.msra.mxu0 0
    %1321 = vmatprep.subr.bf16.mxu0 0
    %1322 = vmatpush1.bf16.msra.mxu0 %v1305
    %1323 = vmatprep.subr.bf16.mxu0 0
    %1324 = vmatpush2.bf16.msra.mxu0 0
    %1325 = vmatprep.subr.bf16.mxu0 0
    %1326 = vmatpush2.bf16.msra.mxu0 0
    %1327 = vmatprep.subr.bf16.mxu0 0
    %1328 = vmatpush2.bf16.msra.mxu0 0
    %1329 = vmatprep.subr.bf16.mxu0 0
    %1330 = vmatpush2.bf16.msra.mxu0 0
    %1331 = vmatprep.subr.bf16.mxu0 0
    %1332 = vmatpush2.bf16.msra.mxu0 0
    %1333 = vmatprep.subr.bf16.mxu0 0
    %1334 = vmatpush2.bf16.msra.mxu0 0
    %1335 = vmatprep.subr.bf16.mxu0 0
    %1336 = vmatpush2.bf16.msra.mxu0 0
    %1337 = vmatprep.subr.bf16.mxu0 0
    %1338 = vmatpush2.bf16.msra.mxu0 0
    %1339 = vmatprep.mubr.bf16.mxu0 0
    %1340 = vmatmul.mubr.bf16.gmra.mxu0 %v1302
    %v1341 = vpop.f32.mrf.mxu0
    %v1342 = vadd.f32 0.0, %v1341
    %v1343 = vpop.f32.mrf.mxu0
    %v1344 = vpop.f32.mrf.mxu0
    %v1345 = vpop.f32.mrf.mxu0
    %1346 = vdwg.mxu0
    %v1347 = vmul.f32 %v1294, %v1247
    %v1348 = vmul.f32 %v1342, %v1248
    %v1349 = vpack.c.bf16 %v1348, %v1347
    %v1350 = vld [vmem:[%s2 + $0x30] sm:$0xf]
    %v1351 = vld [vmem:[%s2 + $0x34] sm:$0xf]
    %v1352 = vld [vmem:[%s2 + $0x38] sm:$0xf]
    %v1353 = vld [vmem:[%s2 + $0x3c] sm:$0xf]
    %v1358 = vunpack.c.l.b16 %v1350
    %v1359 = vunpack.c.l.b16 %v1351
    %v1360 = vunpack.c.l.b16 %v1352
    %v1361 = vunpack.c.l.b16 %v1353
    %v1362 = vpack.c.b16 %v1359, %v1358
    %v1363 = vpack.c.b16 %v1361, %v1360
    %v1367 = vsel %vm277, %v1349, 0
    %1369 = vmatprep.subr.bf16.mxu0 0
    %1370 = vmatpush1.bf16.msra.mxu0 0
    %1371 = vmatprep.subr.bf16.mxu0 0
    %1372 = vmatpush1.bf16.msra.mxu0 0
    %1373 = vmatprep.subr.bf16.mxu0 0
    %1374 = vmatpush1.bf16.msra.mxu0 0
    %1375 = vmatprep.subr.bf16.mxu0 0
    %1376 = vmatpush1.bf16.msra.mxu0 0
    %1377 = vmatprep.subr.bf16.mxu0 0
    %1378 = vmatpush1.bf16.msra.mxu0 0
    %1379 = vmatprep.subr.bf16.mxu0 0
    %1380 = vmatpush1.bf16.msra.mxu0 0
    %1381 = vmatprep.subr.bf16.mxu0 0
    %1382 = vmatpush1.bf16.msra.mxu0 %v1363
    %1383 = vmatprep.subr.bf16.mxu0 0
    %1384 = vmatpush1.bf16.msra.mxu0 %v1362
    %1385 = vmatprep.subr.bf16.mxu0 0
    %1386 = vmatpush2.bf16.msra.mxu0 0
    %1387 = vmatprep.subr.bf16.mxu0 0
    %1388 = vmatpush2.bf16.msra.mxu0 0
    %1389 = vmatprep.subr.bf16.mxu0 0
    %1390 = vmatpush2.bf16.msra.mxu0 0
    %1391 = vmatprep.subr.bf16.mxu0 0
    %1392 = vmatpush2.bf16.msra.mxu0 0
    %1393 = vmatprep.subr.bf16.mxu0 0
    %1394 = vmatpush2.bf16.msra.mxu0 0
    %1395 = vmatprep.subr.bf16.mxu0 0
    %1396 = vmatpush2.bf16.msra.mxu0 0
    %1397 = vmatprep.subr.bf16.mxu0 0
    %1398 = vmatpush2.bf16.msra.mxu0 0
    %1399 = vmatprep.subr.bf16.mxu0 0
    %1400 = vmatpush2.bf16.msra.mxu0 0
    %1401 = vmatprep.mubr.bf16.mxu0 0
    %1402 = vmatmul.mubr.bf16.gmra.mxu0 %v1367
    %v1403 = vpop.f32.mrf.mxu0
    %v1404 = vadd.f32 0.0, %v1403
    %v1405 = vpop.f32.mrf.mxu0
    %v1406 = vpop.f32.mrf.mxu0
    %v1407 = vadd.f32 0.0, %v1406
    %v1408 = vpop.f32.mrf.mxu0
    %1409 = vdwg.mxu0
    %v1410 = vadd.f32 %v1125, %v1404
    %v1411 = vadd.f32 %v1126, %v1407
    %v1412 = vld [vmem:[%s3] sm:$0x1]
    %v1414 = vlaneseq
    %v1415 = vshrl.u32 %v1414, 7
    %v1416 = vsub.s32 0, %v1415
    %v1417 = vrot.slane %v1412, %v1416
    %v1419 = vadd.f32 %v1410, %v1417
    %v1420 = vadd.f32 %v1411, %v1417
    %1421 = vst [vmem:[#allocation2] sm:$0xff] %v1419
    %1422 = vst [vmem:[#allocation2 + $0x8] sm:$0xff] %v1420
    // Predicated region
    $region18: #{multi_head_attention.1} parent=1 // pred_check
      _
    $region19: #{multi_head_attention.1} parent=1 // pred_check_branch
      %1424 = sbr.rel (0) target = $region21
    $region20: #{multi_head_attention.1} parent=1 // pred_region
      %s1426 = ssub.s32 256, 256
      %1427 = vsyncadd [#allocation3], %s1426
      %s1428 = sshll.u32 [#allocation2], 4
      %s1429 = int_to_ptr.vmem [resolvable:$true] %s1428
      %1434 = dma.vmem_to_hbm [thread:$0]  %s1429, 256, %s4, [#allocation3], 128, 128, 8
    $region21: #{multi_head_attention.1} parent=1 // pred_fallthru
      _
    // Predicated region
    $region22: #{multi_head_attention.1} parent=1 // pred_check
      _
    $region23: #{multi_head_attention.1} parent=1 // pred_check_branch
      %1436 = sbr.rel (0) target = $region25
    $region24: #{multi_head_attention.1} parent=1 // pred_region
      %1437 = dma.done [#allocation3], 256
    $region25: #{multi_head_attention.1} parent=1 // pred_fallthru
      _
    %1438 = vsyncpa [#allocation3], 1

</llo_original>
